<compile_context>
chip_gen: v6e
topology: v6e:2x2x1
jax: 0.10.0
libtpu: 0.0.40
codegen_flags: <defaults>
</compile_context>

<pallas_src>
import functools

import jax
import jax.numpy as jnp
from jax.experimental import pallas as pl
from jax.experimental.pallas import tpu as pltpu

_HIDDEN = (32, 64, 128, 256, 1)
_LANE = 128


def _round_up(n, m):
    return ((n + m - 1) // m) * m


def _device_kind():
    try:
        return jax.devices()[0].device_kind.lower()
    except Exception:
        return ""


def _num_tensorcores_per_chip():
    kind = _device_kind()
    # v7x (and v4 / v5p megacore parts) expose 2 TensorCores that "parallel" grid dims shard over.
    if any(tag in kind for tag in ("v7", "7x", "v4", "v5p")):
        return 2
    return 1


def _elementwise_tail_in_compute_dtype():
    kind = _device_kind()
    # v5e's VPU has no bf16 ALUs -> keep the LeakyReLU chain in f32 there; bf16 elsewhere.
    if "v5e" in kind or "v5 lite" in kind or "v5litepod" in kind:
        return False
    return True


def _leaky_relu(x, negative_slope=0.01):
    # General form (valid for any slope), matches nn.LeakyReLU() default slope = 0.01.
    return jnp.where(x >= 0, x, negative_slope * x)


def mlp_kernel(x_ref,
               w1_ref, b1_ref,
               w2_ref, b2_ref,
               w3_ref, b3_ref,
               w4_ref, b4_ref,
               w5_ref, b5_ref,
               o_ref, *, relu_in_compute_dtype):
    """Fused 5-layer MLP on one (tm, F) batch tile; activations kept transposed (features, tm)."""
    cdt = w1_ref.dtype                       # MXU input dtype (bf16 or f32); accumulation is f32
    prec = jax.lax.Precision.HIGHEST if cdt == jnp.float32 else None

    def act(h_f32):
        if relu_in_compute_dtype:            # bf16 tail: halves VALU element-ops on v6e/v7x
            return _leaky_relu(h_f32.astype(cdt))
        return _leaky_relu(h_f32).astype(cdt)  # f32 tail (v5e), downcast only at the dot boundary

    x = x_ref[...].astype(cdt)                                                   # (tm, F)
    # Layer 1: W1 @ x^T via contraction over the shared feature axis (rhs-transposed matmul).
    h = jax.lax.dot_general(w1_ref[...], x, (((1,), (1,)), ((), ())),
                            preferred_element_type=jnp.float32, precision=prec) + b1_ref[...]
    h = act(h)                                                                   # (32, tm)
    # TODO(synk): Dropout(p=0.1) is identity in eval mode; training-mode dropout would use
    # pltpu.prng_seed / pltpu.prng_random_bits here.
    h = jnp.dot(w2_ref[...], h, preferred_element_type=jnp.float32, precision=prec) + b2_ref[...]
    h = act(h)                                                                   # (64, tm)
    h = jnp.dot(w3_ref[...], h, preferred_element_type=jnp.float32, precision=prec) + b3_ref[...]
    h = act(h)                                                                   # (128, tm)
    h = jnp.dot(w4_ref[...], h, preferred_element_type=jnp.float32, precision=prec) + b4_ref[...]
    h = act(h)                                                                   # (256, tm)
    out = jnp.dot(w5_ref[...], h, preferred_element_type=jnp.float32, precision=prec) + b5_ref[...]
    o_ref[...] = out.astype(o_ref.dtype)                                         # (1, tm) lane-dense


def _choose_tile(batch, tile_m, num_cores):
    """Batch tile: >= num_cores grid steps when sensible; 128-multiple unless it covers all rows."""
    per_core = _round_up(pl.cdiv(batch, max(1, num_cores)), _LANE)
    tm = min(max(_LANE, tile_m), per_core)
    tm = _round_up(tm, _LANE)        # output blocks are (1, tm): lane dim must be 128-aligned ...
    if tm >= batch:
        return batch                 # ... unless the block equals the full batch dim
    return tm


def _vmem_limit_bytes(tm, num_feature, in_itemsize, weight_bytes):
    est = 2 * tm * max(num_feature, _LANE) * in_itemsize   # x tiles (double-buffered, lane-padded)
    est += 2 * tm * 4                                      # (1, tm) f32 output tiles
    est += 2 * weight_bytes                                # weights / biases
    est += 2 * tm * sum(_HIDDEN) * 4                       # inter-layer activation slabs (f32 bound)
    est *= 2                                               # headroom for compiler scratch / spills
    return int(min(max(est, 32 * 1024 * 1024), 48 * 1024 * 1024))


def mlp_forward(x, params, *, tile_m=512, relu_in_compute_dtype=None):
    """x: (B, F) float32 or bfloat16 (bf16 halves the dominant HBM read when weights are bf16).
    params: PyTorch-layout weights W{i} (out, in) like nn.Linear.weight; biases b{i} (out, 1)."""
    B, F = x.shape
    num_cores = _num_tensorcores_per_chip()
    tm = _choose_tile(B, tile_m, num_cores)
    grid = (pl.cdiv(B, tm),)

    if relu_in_compute_dtype is None:
        relu_in_compute_dtype = _elementwise_tail_in_compute_dtype()

    f32 = jnp.float32
    operands = [
        params["W1"], params["b1"].astype(f32),
        params["W2"], params["b2"].astype(f32),
        params["W3"], params["b3"].astype(f32),
        params["W4"], params["b4"].astype(f32),
        params["W5"], params["b5"].astype(f32),
    ]
    # Grid-invariant full-array specs (explicit (0, 0) block index; ~90 KB total, fetched once).
    w_specs = [pl.BlockSpec(op.shape, lambda i: (0, 0)) for op in operands]

    weight_bytes = sum(int(op.size) * op.dtype.itemsize for op in operands)
    flops_per_row = 2 * sum(a * b for a, b in zip((F,) + _HIDDEN[:-1], _HIDDEN))
    cost = pl.CostEstimate(
        flops=int(flops_per_row) * int(B),
        transcendentals=0,
        bytes_accessed=int(B * F * x.dtype.itemsize + B * 4 + weight_bytes),
    )

    kernel = functools.partial(mlp_kernel, relu_in_compute_dtype=bool(relu_in_compute_dtype))

    out = pl.pallas_call(
        kernel,
        out_shape=jax.ShapeDtypeStruct((1, B), jnp.float32),
        grid_spec=pltpu.PrefetchScalarGridSpec(
            num_scalar_prefetch=0,
            grid=grid,
            in_specs=[pl.BlockSpec((tm, F), lambda i: (i, 0))] + w_specs,
            out_specs=pl.BlockSpec((1, tm), lambda i: (0, i)),
        ),
        compiler_params=pltpu.CompilerParams(
            dimension_semantics=("parallel",),
            vmem_limit_bytes=_vmem_limit_bytes(tm, F, x.dtype.itemsize, weight_bytes),
        ),
        cost_estimate=cost,
    )(x, *operands)

    return out.reshape(B, 1)


def init_params(key, num_feature, weight_dtype=jnp.bfloat16):
    """PyTorch-layout params. NOTE: bf16 weight storage deviates from the f32 nn.Module (inference
    quantization); pass weight_dtype=jnp.float32 for exact-precision weights."""
    dims = (num_feature,) + _HIDDEN
    params = {}
    for li in range(5):
        key, kw, kb = jax.random.split(key, 3)
        bound = 1.0 / float(dims[li]) ** 0.5
        w = jax.random.uniform(kw, (dims[li + 1], dims[li]), jnp.float32, -bound, bound)
        b = jax.random.uniform(kb, (dims[li + 1], 1), jnp.float32, -bound, bound)
        params[f"W{li + 1}"] = w.astype(weight_dtype)
        params[f"b{li + 1}"] = b
    return params


def mlp_reference_f32(x, params):
    """Full-f32 reference of the PyTorch eval-mode forward."""
    h = x.astype(jnp.float32)
    for li in range(1, 6):
        w = params[f"W{li}"].astype(jnp.float32)
        b = params[f"b{li}"].astype(jnp.float32)
        h = jnp.dot(h, w.T, precision=jax.lax.Precision.HIGHEST) + b.T
        if li < 5:
            h = _leaky_relu(h)
    return h


def mlp_reference_matched(x, params, *, relu_in_compute_dtype=None):
    """Reference emulating the kernel's precision recipe (same cast points / f32 accumulation)."""
    if relu_in_compute_dtype is None:
        relu_in_compute_dtype = _elementwise_tail_in_compute_dtype()
    cdt = params["W1"].dtype
    h = x.astype(jnp.float32)
    for li in range(1, 6):
        w = params[f"W{li}"].astype(cdt)
        b = params[f"b{li}"].astype(jnp.float32)
        h = jnp.dot(h.astype(cdt), w.T, preferred_element_type=jnp.float32) + b.T
        if li < 5:
            h = _leaky_relu(h.astype(cdt)) if relu_in_compute_dtype else _leaky_relu(h)
    return h


if __name__ == "__main__":
    key = jax.random.PRNGKey(0)
    num_feature = 8
    kx, kx2, kp = jax.random.split(key, 3)
    params = init_params(kp, num_feature, weight_dtype=jnp.bfloat16)

    # Case 1: lane-aligned batch (may split into 2 grid steps on 2-TensorCore chips).
    batch = 512
    x = jax.random.normal(kx, (batch, num_feature), jnp.float32)
    fwd = jax.jit(mlp_forward, static_argnames=("tile_m", "relu_in_compute_dtype"))
    out = jax.block_until_ready(fwd(x, params))
    assert out.shape == (batch, 1)

    ref_matched = mlp_reference_matched(x, params)
    assert jnp.allclose(out, ref_matched, atol=1e-4, rtol=1e-3), float(
        jnp.max(jnp.abs(out - ref_matched)))
    ref_f32 = mlp_reference_f32(x, params)  # loose check vs f32 module (delta = bf16 weights)
    assert float(jnp.max(jnp.abs(out - ref_f32))) < 5e-2

    # Case 2: ragged batch with a forced multi-step grid (exercises Pallas boundary-block masking).
    batch2 = 300
    x2 = jax.random.normal(kx2, (batch2, num_feature), jnp.float32)
    out2 = jax.block_until_ready(mlp_forward(x2, params, tile_m=128))
    assert out2.shape == (batch2, 1)
    ref2 = mlp_reference_matched(x2, params)
    assert jnp.allclose(out2, ref2, atol=1e-4, rtol=1e-3), float(jnp.max(jnp.abs(out2 - ref2)))

    print("KERNEL_OK")
</pallas_src>

<mosaic_0001>
module attributes {stable_mosaic.version = 11 : i64} {
  func.func @mlp_kernel(%arg0: i32, %arg1: memref<512x8xf32, #tpu.memory_space<vmem>>, %arg2: memref<32x8xbf16, #tpu.memory_space<vmem>>, %arg3: memref<32x1xf32, #tpu.memory_space<vmem>>, %arg4: memref<64x32xbf16, #tpu.memory_space<vmem>>, %arg5: memref<64x1xf32, #tpu.memory_space<vmem>>, %arg6: memref<128x64xbf16, #tpu.memory_space<vmem>>, %arg7: memref<128x1xf32, #tpu.memory_space<vmem>>, %arg8: memref<256x128xbf16, #tpu.memory_space<vmem>>, %arg9: memref<256x1xf32, #tpu.memory_space<vmem>>, %arg10: memref<1x256xbf16, #tpu.memory_space<vmem>>, %arg11: memref<1x1xf32, #tpu.memory_space<vmem>>, %arg12: memref<1x512xf32, #tpu.memory_space<vmem>>) attributes {dimension_semantics = [#tpu.dimension_semantics<parallel>], iteration_bounds = array<i64: 1>, scalar_prefetch = 0 : i64, scratch_operands = 0 : i64, tpu.core_type = #tpu.core_type<tc>, window_params = [{transform_indices = @transform_0, window_bounds = array<i64: 512, 8>}, {pipeline_mode = #tpu.pipeline_mode<synchronous>, transform_indices = @transform_1, window_bounds = array<i64: 32, 8>}, {pipeline_mode = #tpu.pipeline_mode<synchronous>, transform_indices = @transform_2, window_bounds = array<i64: 32, 1>}, {pipeline_mode = #tpu.pipeline_mode<synchronous>, transform_indices = @transform_3, window_bounds = array<i64: 64, 32>}, {pipeline_mode = #tpu.pipeline_mode<synchronous>, transform_indices = @transform_4, window_bounds = array<i64: 64, 1>}, {pipeline_mode = #tpu.pipeline_mode<synchronous>, transform_indices = @transform_5, window_bounds = array<i64: 128, 64>}, {pipeline_mode = #tpu.pipeline_mode<synchronous>, transform_indices = @transform_6, window_bounds = array<i64: 128, 1>}, {pipeline_mode = #tpu.pipeline_mode<synchronous>, transform_indices = @transform_7, window_bounds = array<i64: 256, 128>}, {pipeline_mode = #tpu.pipeline_mode<synchronous>, transform_indices = @transform_8, window_bounds = array<i64: 256, 1>}, {pipeline_mode = #tpu.pipeline_mode<synchronous>, transform_indices = @transform_9, window_bounds = array<i64: 1, 256>}, {pipeline_mode = #tpu.pipeline_mode<synchronous>, transform_indices = @transform_10, window_bounds = array<i64: 1, 1>}, {transform_indices = @transform_11, window_bounds = array<i64: 1, 512>}]} {
    %c0 = arith.constant 0 : index
    %c0_0 = arith.constant 0 : index
    %0 = vector.load %arg1[%c0, %c0_0] : memref<512x8xf32, #tpu.memory_space<vmem>>, vector<512x8xf32>
    %1 = arith.truncf %0 : vector<512x8xf32> to vector<512x8xbf16>
    %c0_1 = arith.constant 0 : index
    %c0_2 = arith.constant 0 : index
    %2 = vector.load %arg2[%c0_1, %c0_2] : memref<32x8xbf16, #tpu.memory_space<vmem>>, vector<32x8xbf16>
    %cst = arith.constant dense<0.000000e+00> : vector<32x512xf32>
    %3 = tpu.matmul %2, %1, %cst {dimension_numbers = #tpu.dot_dimension_numbers<[1], [1], [0], [0], [0, 0, 1, 0], [], []>} : vector<32x8xbf16>, vector<512x8xbf16>, vector<32x512xf32> -> vector<32x512xf32>
    %c0_3 = arith.constant 0 : index
    %c0_4 = arith.constant 0 : index
    %4 = vector.load %arg3[%c0_3, %c0_4] : memref<32x1xf32, #tpu.memory_space<vmem>>, vector<32x1xf32>
    %5 = vector.broadcast %4 : vector<32x1xf32> to vector<32x512xf32>
    %6 = arith.addf %3, %5 : vector<32x512xf32>
    %7 = arith.truncf %6 : vector<32x512xf32> to vector<32x512xbf16>
    %cst_5 = arith.constant 0.000000e+00 : bf16
    %8 = vector.broadcast %cst_5 : bf16 to vector<32x512xbf16>
    %9 = arith.cmpf oge, %7, %8 : vector<32x512xbf16>
    %cst_6 = arith.constant 1.000980e-02 : bf16
    %10 = vector.broadcast %cst_6 : bf16 to vector<32x512xbf16>
    %11 = arith.mulf %10, %7 : vector<32x512xbf16>
    %12 = arith.select %9, %7, %11 : vector<32x512xi1>, vector<32x512xbf16>
    %c0_7 = arith.constant 0 : index
    %c0_8 = arith.constant 0 : index
    %13 = vector.load %arg4[%c0_7, %c0_8] : memref<64x32xbf16, #tpu.memory_space<vmem>>, vector<64x32xbf16>
    %cst_9 = arith.constant dense<0.000000e+00> : vector<64x512xf32>
    %14 = tpu.matmul %13, %12, %cst_9 {dimension_numbers = #tpu.dot_dimension_numbers<[1], [0], [0], [1], [0, 0, 1, 1], [], []>} : vector<64x32xbf16>, vector<32x512xbf16>, vector<64x512xf32> -> vector<64x512xf32>
    %c0_10 = arith.constant 0 : index
    %c0_11 = arith.constant 0 : index
    %15 = vector.load %arg5[%c0_10, %c0_11] : memref<64x1xf32, #tpu.memory_space<vmem>>, vector<64x1xf32>
    %16 = vector.broadcast %15 : vector<64x1xf32> to vector<64x512xf32>
    %17 = arith.addf %14, %16 : vector<64x512xf32>
    %18 = arith.truncf %17 : vector<64x512xf32> to vector<64x512xbf16>
    %cst_12 = arith.constant 0.000000e+00 : bf16
    %19 = vector.broadcast %cst_12 : bf16 to vector<64x512xbf16>
    %20 = arith.cmpf oge, %18, %19 : vector<64x512xbf16>
    %cst_13 = arith.constant 1.000980e-02 : bf16
    %21 = vector.broadcast %cst_13 : bf16 to vector<64x512xbf16>
    %22 = arith.mulf %21, %18 : vector<64x512xbf16>
    %23 = arith.select %20, %18, %22 : vector<64x512xi1>, vector<64x512xbf16>
    %c0_14 = arith.constant 0 : index
    %c0_15 = arith.constant 0 : index
    %24 = vector.load %arg6[%c0_14, %c0_15] : memref<128x64xbf16, #tpu.memory_space<vmem>>, vector<128x64xbf16>
    %cst_16 = arith.constant dense<0.000000e+00> : vector<128x512xf32>
    %25 = tpu.matmul %24, %23, %cst_16 {dimension_numbers = #tpu.dot_dimension_numbers<[1], [0], [0], [1], [0, 0, 1, 1], [], []>} : vector<128x64xbf16>, vector<64x512xbf16>, vector<128x512xf32> -> vector<128x512xf32>
    %c0_17 = arith.constant 0 : index
    %c0_18 = arith.constant 0 : index
    %26 = vector.load %arg7[%c0_17, %c0_18] : memref<128x1xf32, #tpu.memory_space<vmem>>, vector<128x1xf32>
    %27 = vector.broadcast %26 : vector<128x1xf32> to vector<128x512xf32>
    %28 = arith.addf %25, %27 : vector<128x512xf32>
    %29 = arith.truncf %28 : vector<128x512xf32> to vector<128x512xbf16>
    %cst_19 = arith.constant 0.000000e+00 : bf16
    %30 = vector.broadcast %cst_19 : bf16 to vector<128x512xbf16>
    %31 = arith.cmpf oge, %29, %30 : vector<128x512xbf16>
    %cst_20 = arith.constant 1.000980e-02 : bf16
    %32 = vector.broadcast %cst_20 : bf16 to vector<128x512xbf16>
    %33 = arith.mulf %32, %29 : vector<128x512xbf16>
    %34 = arith.select %31, %29, %33 : vector<128x512xi1>, vector<128x512xbf16>
    %c0_21 = arith.constant 0 : index
    %c0_22 = arith.constant 0 : index
    %35 = vector.load %arg8[%c0_21, %c0_22] : memref<256x128xbf16, #tpu.memory_space<vmem>>, vector<256x128xbf16>
    %cst_23 = arith.constant dense<0.000000e+00> : vector<256x512xf32>
    %36 = tpu.matmul %35, %34, %cst_23 {dimension_numbers = #tpu.dot_dimension_numbers<[1], [0], [0], [1], [0, 0, 1, 1], [], []>} : vector<256x128xbf16>, vector<128x512xbf16>, vector<256x512xf32> -> vector<256x512xf32>
    %c0_24 = arith.constant 0 : index
    %c0_25 = arith.constant 0 : index
    %37 = vector.load %arg9[%c0_24, %c0_25] : memref<256x1xf32, #tpu.memory_space<vmem>>, vector<256x1xf32>
    %38 = vector.broadcast %37 : vector<256x1xf32> to vector<256x512xf32>
    %39 = arith.addf %36, %38 : vector<256x512xf32>
    %40 = arith.truncf %39 : vector<256x512xf32> to vector<256x512xbf16>
    %cst_26 = arith.constant 0.000000e+00 : bf16
    %41 = vector.broadcast %cst_26 : bf16 to vector<256x512xbf16>
    %42 = arith.cmpf oge, %40, %41 : vector<256x512xbf16>
    %cst_27 = arith.constant 1.000980e-02 : bf16
    %43 = vector.broadcast %cst_27 : bf16 to vector<256x512xbf16>
    %44 = arith.mulf %43, %40 : vector<256x512xbf16>
    %45 = arith.select %42, %40, %44 : vector<256x512xi1>, vector<256x512xbf16>
    %c0_28 = arith.constant 0 : index
    %c0_29 = arith.constant 0 : index
    %46 = vector.load %arg10[%c0_28, %c0_29] : memref<1x256xbf16, #tpu.memory_space<vmem>>, vector<1x256xbf16>
    %cst_30 = arith.constant dense<0.000000e+00> : vector<1x512xf32>
    %47 = tpu.matmul %46, %45, %cst_30 {dimension_numbers = #tpu.dot_dimension_numbers<[1], [0], [0], [1], [0, 0, 1, 1], [], []>} : vector<1x256xbf16>, vector<256x512xbf16>, vector<1x512xf32> -> vector<1x512xf32>
    %c0_31 = arith.constant 0 : index
    %c0_32 = arith.constant 0 : index
    %48 = vector.load %arg11[%c0_31, %c0_32] : memref<1x1xf32, #tpu.memory_space<vmem>>, vector<1x1xf32>
    %49 = vector.broadcast %48 : vector<1x1xf32> to vector<1x512xf32>
    %50 = arith.addf %47, %49 : vector<1x512xf32>
    %c0_33 = arith.constant 0 : index
    %c0_34 = arith.constant 0 : index
    %51 = vector.load %arg12[%c0_33, %c0_34] : memref<1x512xf32, #tpu.memory_space<vmem>>, vector<1x512xf32>
    tpu.vector_store %arg12[%c0_33, %c0_34], %50 {strides = array<i32>} : memref<1x512xf32, #tpu.memory_space<vmem>>, vector<1x512xf32>,
    return
  }
  func.func @transform_0(%arg0: i32) -> (i32, i32) {
    %c0_i32 = arith.constant 0 : i32
    %c0_i32_0 = arith.constant 0 : i32
    return %arg0, %c0_i32 : i32, i32
  }
  func.func @transform_1(%arg0: i32) -> (i32, i32) {
    %c0_i32 = arith.constant 0 : i32
    %c0_i32_0 = arith.constant 0 : i32
    %c0_i32_1 = arith.constant 0 : i32
    return %c0_i32, %c0_i32_0 : i32, i32
  }
  func.func @transform_2(%arg0: i32) -> (i32, i32) {
    %c0_i32 = arith.constant 0 : i32
    %c0_i32_0 = arith.constant 0 : i32
    %c0_i32_1 = arith.constant 0 : i32
    return %c0_i32, %c0_i32_0 : i32, i32
  }
  func.func @transform_3(%arg0: i32) -> (i32, i32) {
    %c0_i32 = arith.constant 0 : i32
    %c0_i32_0 = arith.constant 0 : i32
    %c0_i32_1 = arith.constant 0 : i32
    return %c0_i32, %c0_i32_0 : i32, i32
  }
  func.func @transform_4(%arg0: i32) -> (i32, i32) {
    %c0_i32 = arith.constant 0 : i32
    %c0_i32_0 = arith.constant 0 : i32
    %c0_i32_1 = arith.constant 0 : i32
    return %c0_i32, %c0_i32_0 : i32, i32
  }
  func.func @transform_5(%arg0: i32) -> (i32, i32) {
    %c0_i32 = arith.constant 0 : i32
    %c0_i32_0 = arith.constant 0 : i32
    %c0_i32_1 = arith.constant 0 : i32
    return %c0_i32, %c0_i32_0 : i32, i32
  }
  func.func @transform_6(%arg0: i32) -> (i32, i32) {
    %c0_i32 = arith.constant 0 : i32
    %c0_i32_0 = arith.constant 0 : i32
    %c0_i32_1 = arith.constant 0 : i32
    return %c0_i32, %c0_i32_0 : i32, i32
  }
  func.func @transform_7(%arg0: i32) -> (i32, i32) {
    %c0_i32 = arith.constant 0 : i32
    %c0_i32_0 = arith.constant 0 : i32
    %c0_i32_1 = arith.constant 0 : i32
    return %c0_i32, %c0_i32_0 : i32, i32
  }
  func.func @transform_8(%arg0: i32) -> (i32, i32) {
    %c0_i32 = arith.constant 0 : i32
    %c0_i32_0 = arith.constant 0 : i32
    %c0_i32_1 = arith.constant 0 : i32
    return %c0_i32, %c0_i32_0 : i32, i32
  }
  func.func @transform_9(%arg0: i32) -> (i32, i32) {
    %c0_i32 = arith.constant 0 : i32
    %c0_i32_0 = arith.constant 0 : i32
    %c0_i32_1 = arith.constant 0 : i32
    return %c0_i32, %c0_i32_0 : i32, i32
  }
  func.func @transform_10(%arg0: i32) -> (i32, i32) {
    %c0_i32 = arith.constant 0 : i32
    %c0_i32_0 = arith.constant 0 : i32
    %c0_i32_1 = arith.constant 0 : i32
    return %c0_i32, %c0_i32_0 : i32, i32
  }
  func.func @transform_11(%arg0: i32) -> (i32, i32) {
    %c0_i32 = arith.constant 0 : i32
    %c0_i32_0 = arith.constant 0 : i32
    return %c0_i32, %arg0 : i32, i32
  }
}

</mosaic_0001>

<llo_original>
// kernel: mlp_forward.1
$region0: #{mlp_forward.1}
  #allocation0 [shape = 'u32[]', space=smem, size = 0x4, offset = 0x4, fixed_abs, tag = 'smem constant byte address 0x4 - core index']
  #allocation1 [shape = 'u32[144,128]{1,0:T(1,128)}', space=vmem, size = 0x12000, scoped, tag = 'internal scratch']
  #allocation2 [shape = 'f32[1,1]{1,0:T(1,128)S(1)}', space=vmem, size = 0x200, scoped, tag = 'scoped memory for mlp_forward.1']
  %s0 = inlined_call_operand.vmem [shape: f32[512,8], index: 0, kind: input, shape index: {}]
  %s1 = inlined_call_operand.vmem [shape: bf16[32,8], index: 1, kind: input, shape index: {}]
  %s2 = inlined_call_operand.vmem [shape: f32[32,1], index: 2, kind: input, shape index: {}]
  %s3 = inlined_call_operand.vmem [shape: bf16[64,32], index: 3, kind: input, shape index: {}]
  %s4 = inlined_call_operand.vmem [shape: f32[64,1], index: 4, kind: input, shape index: {}]
  %s5 = inlined_call_operand.vmem [shape: bf16[128,64], index: 5, kind: input, shape index: {}]
  %s6 = inlined_call_operand.vmem [shape: f32[128,1], index: 6, kind: input, shape index: {}]
  %s7 = inlined_call_operand.vmem [shape: bf16[256,128], index: 7, kind: input, shape index: {}]
  %s8 = inlined_call_operand.vmem [shape: f32[256,1], index: 8, kind: input, shape index: {}]
  %s9 = inlined_call_operand.vmem [shape: bf16[1,256], index: 9, kind: input, shape index: {}]
  %s10 = inlined_call_operand.<no memory space> [shape: f32[1,1], index: 10, kind: input, shape index: {}]
  %s11 = inlined_call_operand.hbm [shape: f32[1,512], index: 11, kind: output, shape index: {}]
  %s12 = sld [smem:[#allocation0]]
  $region54: #{mlp_forward.1} parent=0
    _
  %s14 = ssub.s32 1, %s12
  %s15 = scalar_select 0, %s14, %s12
  %v16 = vstv %s10
  %17 = vst [vmem:[#allocation2] sm:$0x1] %v16
  $region1: #{mlp_forward.1} parent=0
    #allocation3 [shape = 'u8[2048]{0}', space=vmem, size = 0x800, scoped, tag = 'output window, operand 0, single buffered']
    #allocation4 [shape = 's32[1]{0}', space=sflag, size = 0x4, scoped, tag = 'scoped memory for mlp_forward.1']
    %18 = vsyncpa [#allocation4], 0
    // Predicated region
    $region2: #{mlp_forward.1} parent=1 // pred_check
      _
    $region3: #{mlp_forward.1} parent=1 // pred_check_branch
      %20 = sbr.rel (0) target = $region5
    $region4: #{mlp_forward.1} parent=1 // pred_region
      _
    $region5: #{mlp_forward.1} parent=1 // pred_fallthru
      _
    // Predicated region
    $region6: #{mlp_forward.1} parent=1 // pred_check
      _
    $region7: #{mlp_forward.1} parent=1 // pred_check_branch
      %22 = sbr.rel (0) target = $region9
    $region8: #{mlp_forward.1} parent=1 // pred_region
      _
    $region9: #{mlp_forward.1} parent=1 // pred_fallthru
      _
    // Predicated region
    $region10: #{mlp_forward.1} parent=1 // pred_check
      _
    $region11: #{mlp_forward.1} parent=1 // pred_check_branch
      %24 = sbr.rel (0) target = $region13
    $region12: #{mlp_forward.1} parent=1 // pred_region
      _
    $region13: #{mlp_forward.1} parent=1 // pred_fallthru
      _
    // Predicated region
    $region14: #{mlp_forward.1} parent=1 // pred_check
      _
    $region15: #{mlp_forward.1} parent=1 // pred_check_branch
      %26 = sbr.rel (0) target = $region17
    $region16: #{mlp_forward.1} parent=1 // pred_region
      _
    $region17: #{mlp_forward.1} parent=1 // pred_fallthru
      _
    // Predicated region
    $region18: #{mlp_forward.1} parent=1 // pred_check
      _
    $region19: #{mlp_forward.1} parent=1 // pred_check_branch
      %28 = sbr.rel (0) target = $region21
    $region20: #{mlp_forward.1} parent=1 // pred_region
      _
    $region21: #{mlp_forward.1} parent=1 // pred_fallthru
      _
    // Predicated region
    $region22: #{mlp_forward.1} parent=1 // pred_check
      _
    $region23: #{mlp_forward.1} parent=1 // pred_check_branch
      %30 = sbr.rel (0) target = $region25
    $region24: #{mlp_forward.1} parent=1 // pred_region
      _
    $region25: #{mlp_forward.1} parent=1 // pred_fallthru
      _
    // Predicated region
    $region26: #{mlp_forward.1} parent=1 // pred_check
      _
    $region27: #{mlp_forward.1} parent=1 // pred_check_branch
      %32 = sbr.rel (0) target = $region29
    $region28: #{mlp_forward.1} parent=1 // pred_region
      _
    $region29: #{mlp_forward.1} parent=1 // pred_fallthru
      _
    // Predicated region
    $region30: #{mlp_forward.1} parent=1 // pred_check
      _
    $region31: #{mlp_forward.1} parent=1 // pred_check_branch
      %34 = sbr.rel (0) target = $region33
    $region32: #{mlp_forward.1} parent=1 // pred_region
      _
    $region33: #{mlp_forward.1} parent=1 // pred_fallthru
      _
    // Predicated region
    $region34: #{mlp_forward.1} parent=1 // pred_check
      _
    $region35: #{mlp_forward.1} parent=1 // pred_check_branch
      %36 = sbr.rel (0) target = $region37
    $region36: #{mlp_forward.1} parent=1 // pred_region
      _
    $region37: #{mlp_forward.1} parent=1 // pred_fallthru
      _
    // Predicated region
    $region38: #{mlp_forward.1} parent=1 // pred_check
      _
    $region39: #{mlp_forward.1} parent=1 // pred_check_branch
      %38 = sbr.rel (0) target = $region41
    $region40: #{mlp_forward.1} parent=1 // pred_region
      _
    $region41: #{mlp_forward.1} parent=1 // pred_fallthru
      _
    // Predicated region
    $region42: #{mlp_forward.1} parent=1 // pred_check
      _
    $region43: #{mlp_forward.1} parent=1 // pred_check_branch
      %40 = sbr.rel (0) target = $region45
    $region44: #{mlp_forward.1} parent=1 // pred_region
      _
    $region45: #{mlp_forward.1} parent=1 // pred_fallthru
      _
    %v43 = vld [vmem:[%s0] sm:$0xff]
    %v44 = vld [vmem:[%s0 + $0x8] sm:$0xff]
    %v45 = vld [vmem:[%s0 + $0x10] sm:$0xff]
    %v46 = vld [vmem:[%s0 + $0x18] sm:$0xff]
    %v47 = vld [vmem:[%s0 + $0x20] sm:$0xff]
    %v48 = vld [vmem:[%s0 + $0x28] sm:$0xff]
    %v49 = vld [vmem:[%s0 + $0x30] sm:$0xff]
    %v50 = vld [vmem:[%s0 + $0x38] sm:$0xff]
    %v51 = vld [vmem:[%s0 + $0x40] sm:$0xff]
    %v52 = vld [vmem:[%s0 + $0x48] sm:$0xff]
    %v53 = vld [vmem:[%s0 + $0x50] sm:$0xff]
    %v54 = vld [vmem:[%s0 + $0x58] sm:$0xff]
    %v55 = vld [vmem:[%s0 + $0x60] sm:$0xff]
    %v56 = vld [vmem:[%s0 + $0x68] sm:$0xff]
    %v57 = vld [vmem:[%s0 + $0x70] sm:$0xff]
    %v58 = vld [vmem:[%s0 + $0x78] sm:$0xff]
    %v59 = vld [vmem:[%s0 + $0x80] sm:$0xff]
    %v60 = vld [vmem:[%s0 + $0x88] sm:$0xff]
    %v61 = vld [vmem:[%s0 + $0x90] sm:$0xff]
    %v62 = vld [vmem:[%s0 + $0x98] sm:$0xff]
    %v63 = vld [vmem:[%s0 + $0xa0] sm:$0xff]
    %v64 = vld [vmem:[%s0 + $0xa8] sm:$0xff]
    %v65 = vld [vmem:[%s0 + $0xb0] sm:$0xff]
    %v66 = vld [vmem:[%s0 + $0xb8] sm:$0xff]
    %v67 = vld [vmem:[%s0 + $0xc0] sm:$0xff]
    %v68 = vld [vmem:[%s0 + $0xc8] sm:$0xff]
    %v69 = vld [vmem:[%s0 + $0xd0] sm:$0xff]
    %v70 = vld [vmem:[%s0 + $0xd8] sm:$0xff]
    %v71 = vld [vmem:[%s0 + $0xe0] sm:$0xff]
    %v72 = vld [vmem:[%s0 + $0xe8] sm:$0xff]
    %v73 = vld [vmem:[%s0 + $0xf0] sm:$0xff]
    %v74 = vld [vmem:[%s0 + $0xf8] sm:$0xff]
    %v75 = vld [vmem:[%s0 + $0x100] sm:$0xff]
    %v76 = vld [vmem:[%s0 + $0x108] sm:$0xff]
    %v77 = vld [vmem:[%s0 + $0x110] sm:$0xff]
    %v78 = vld [vmem:[%s0 + $0x118] sm:$0xff]
    %v79 = vld [vmem:[%s0 + $0x120] sm:$0xff]
    %v80 = vld [vmem:[%s0 + $0x128] sm:$0xff]
    %v81 = vld [vmem:[%s0 + $0x130] sm:$0xff]
    %v82 = vld [vmem:[%s0 + $0x138] sm:$0xff]
    %v83 = vld [vmem:[%s0 + $0x140] sm:$0xff]
    %v84 = vld [vmem:[%s0 + $0x148] sm:$0xff]
    %v85 = vld [vmem:[%s0 + $0x150] sm:$0xff]
    %v86 = vld [vmem:[%s0 + $0x158] sm:$0xff]
    %v87 = vld [vmem:[%s0 + $0x160] sm:$0xff]
    %v88 = vld [vmem:[%s0 + $0x168] sm:$0xff]
    %v89 = vld [vmem:[%s0 + $0x170] sm:$0xff]
    %v90 = vld [vmem:[%s0 + $0x178] sm:$0xff]
    %v91 = vld [vmem:[%s0 + $0x180] sm:$0xff]
    %v92 = vld [vmem:[%s0 + $0x188] sm:$0xff]
    %v93 = vld [vmem:[%s0 + $0x190] sm:$0xff]
    %v94 = vld [vmem:[%s0 + $0x198] sm:$0xff]
    %v95 = vld [vmem:[%s0 + $0x1a0] sm:$0xff]
    %v96 = vld [vmem:[%s0 + $0x1a8] sm:$0xff]
    %v97 = vld [vmem:[%s0 + $0x1b0] sm:$0xff]
    %v98 = vld [vmem:[%s0 + $0x1b8] sm:$0xff]
    %v99 = vld [vmem:[%s0 + $0x1c0] sm:$0xff]
    %v100 = vld [vmem:[%s0 + $0x1c8] sm:$0xff]
    %v101 = vld [vmem:[%s0 + $0x1d0] sm:$0xff]
    %v102 = vld [vmem:[%s0 + $0x1d8] sm:$0xff]
    %v103 = vld [vmem:[%s0 + $0x1e0] sm:$0xff]
    %v104 = vld [vmem:[%s0 + $0x1e8] sm:$0xff]
    %v105 = vld [vmem:[%s0 + $0x1f0] sm:$0xff]
    %v106 = vld [vmem:[%s0 + $0x1f8] sm:$0xff]
    %v107 = vpack.c.bf16 %v44, %v43
    %v108 = vpack.c.bf16 %v46, %v45
    %v109 = vpack.c.bf16 %v48, %v47
    %v110 = vpack.c.bf16 %v50, %v49
    %v111 = vpack.c.bf16 %v52, %v51
    %v112 = vpack.c.bf16 %v54, %v53
    %v113 = vpack.c.bf16 %v56, %v55
    %v114 = vpack.c.bf16 %v58, %v57
    %v115 = vpack.c.bf16 %v60, %v59
    %v116 = vpack.c.bf16 %v62, %v61
    %v117 = vpack.c.bf16 %v64, %v63
    %v118 = vpack.c.bf16 %v66, %v65
    %v119 = vpack.c.bf16 %v68, %v67
    %v120 = vpack.c.bf16 %v70, %v69
    %v121 = vpack.c.bf16 %v72, %v71
    %v122 = vpack.c.bf16 %v74, %v73
    %v123 = vpack.c.bf16 %v76, %v75
    %v124 = vpack.c.bf16 %v78, %v77
    %v125 = vpack.c.bf16 %v80, %v79
    %v126 = vpack.c.bf16 %v82, %v81
    %v127 = vpack.c.bf16 %v84, %v83
    %v128 = vpack.c.bf16 %v86, %v85
    %v129 = vpack.c.bf16 %v88, %v87
    %v130 = vpack.c.bf16 %v90, %v89
    %v131 = vpack.c.bf16 %v92, %v91
    %v132 = vpack.c.bf16 %v94, %v93
    %v133 = vpack.c.bf16 %v96, %v95
    %v134 = vpack.c.bf16 %v98, %v97
    %v135 = vpack.c.bf16 %v100, %v99
    %v136 = vpack.c.bf16 %v102, %v101
    %v137 = vpack.c.bf16 %v104, %v103
    %v138 = vpack.c.bf16 %v106, %v105
    %v139 = vld [vmem:[%s1] sm:$0xf]
    %v140 = vld [vmem:[%s1 + $0x4] sm:$0xf]
    %v141 = vld [vmem:[%s1 + $0x8] sm:$0xf]
    %v142 = vld [vmem:[%s1 + $0xc] sm:$0xf]
    %v143 = vld [vmem:[%s2] sm:$0xff]
    %v144 = vld [vmem:[%s2 + $0x8] sm:$0xff]
    %v145 = vld [vmem:[%s2 + $0x10] sm:$0xff]
    %v146 = vld [vmem:[%s2 + $0x18] sm:$0xff]
    %148 = vset.pattern.permute.xlu0 0
    %149 = vperm.xlu0 %148, %v143
    %v150 = vpop.permute.xlu0 %149
    %153 = vset.pattern.permute.xlu0 0
    %154 = vperm.xlu0 %153, %v144
    %v155 = vpop.permute.xlu0 %154
    %158 = vset.pattern.permute.xlu0 0
    %159 = vperm.xlu0 %158, %v145
    %v160 = vpop.permute.xlu0 %159
    %163 = vset.pattern.permute.xlu0 0
    %164 = vperm.xlu0 %163, %v146
    %v165 = vpop.permute.xlu0 %164
    %v171 = vunpack.c.l.b16 %v139
    %v172 = vunpack.c.l.b16 %v140
    %v173 = vunpack.c.l.b16 %v141
    %v174 = vunpack.c.l.b16 %v142
    %v175 = vpack.c.b16 %v172, %v171
    %v176 = vpack.c.b16 %v174, %v173
    %vm177 = vcmask 64512
    %v179 = vsel %vm177, %v175, 0
    %v182 = vsel %vm177, %v176, 0
    %v185 = vsel %vm177, %v107, 0
    %v188 = vsel %vm177, %v108, 0
    %v191 = vsel %vm177, %v109, 0
    %v194 = vsel %vm177, %v110, 0
    %v197 = vsel %vm177, %v111, 0
    %v200 = vsel %vm177, %v112, 0
    %v203 = vsel %vm177, %v113, 0
    %v206 = vsel %vm177, %v114, 0
    %v209 = vsel %vm177, %v115, 0
    %v212 = vsel %vm177, %v116, 0
    %v215 = vsel %vm177, %v117, 0
    %v218 = vsel %vm177, %v118, 0
    %v221 = vsel %vm177, %v119, 0
    %v224 = vsel %vm177, %v120, 0
    %v227 = vsel %vm177, %v121, 0
    %v230 = vsel %vm177, %v122, 0
    %v233 = vsel %vm177, %v123, 0
    %v236 = vsel %vm177, %v124, 0
    %v239 = vsel %vm177, %v125, 0
    %v242 = vsel %vm177, %v126, 0
    %v245 = vsel %vm177, %v127, 0
    %v248 = vsel %vm177, %v128, 0
    %v251 = vsel %vm177, %v129, 0
    %v254 = vsel %vm177, %v130, 0
    %v257 = vsel %vm177, %v131, 0
    %v260 = vsel %vm177, %v132, 0
    %v263 = vsel %vm177, %v133, 0
    %v266 = vsel %vm177, %v134, 0
    %v269 = vsel %vm177, %v135, 0
    %v272 = vsel %vm177, %v136, 0
    %v275 = vsel %vm177, %v137, 0
    %v278 = vsel %vm177, %v138, 0
    %280 = vmatprep.subr.bf16.mxu0 0
    %281 = vmatpush1.bf16.xpose.msra.mxu0 %v206
    %282 = vmatprep.subr.bf16.mxu0 0
    %283 = vmatpush1.bf16.xpose.msra.mxu0 %v203
    %284 = vmatprep.subr.bf16.mxu0 0
    %285 = vmatpush1.bf16.xpose.msra.mxu0 %v200
    %286 = vmatprep.subr.bf16.mxu0 0
    %287 = vmatpush1.bf16.xpose.msra.mxu0 %v197
    %288 = vmatprep.subr.bf16.mxu0 0
    %289 = vmatpush1.bf16.xpose.msra.mxu0 %v194
    %290 = vmatprep.subr.bf16.mxu0 0
    %291 = vmatpush1.bf16.xpose.msra.mxu0 %v191
    %292 = vmatprep.subr.bf16.mxu0 0
    %293 = vmatpush1.bf16.xpose.msra.mxu0 %v188
    %294 = vmatprep.subr.bf16.mxu0 0
    %295 = vmatpush1.bf16.xpose.msra.mxu0 %v185
    %296 = vmatprep.subr.bf16.mxu0 0
    %297 = vmatpush2.bf16.xpose.msra.mxu0 %v230
    %298 = vmatprep.subr.bf16.mxu0 0
    %299 = vmatpush2.bf16.xpose.msra.mxu0 %v227
    %300 = vmatprep.subr.bf16.mxu0 0
    %301 = vmatpush2.bf16.xpose.msra.mxu0 %v224
    %302 = vmatprep.subr.bf16.mxu0 0
    %303 = vmatpush2.bf16.xpose.msra.mxu0 %v221
    %304 = vmatprep.subr.bf16.mxu0 0
    %305 = vmatpush2.bf16.xpose.msra.mxu0 %v218
    %306 = vmatprep.subr.bf16.mxu0 0
    %307 = vmatpush2.bf16.xpose.msra.mxu0 %v215
    %308 = vmatprep.subr.bf16.mxu0 0
    %309 = vmatpush2.bf16.xpose.msra.mxu0 %v212
    %310 = vmatprep.subr.bf16.mxu0 0
    %311 = vmatpush2.bf16.xpose.msra.mxu0 %v209
    %312 = vmatprep.mubr.bf16.mxu0 0
    %313 = vmatmul.mubr.bf16.gmra.mxu0 %v179
    %v314 = vpop.f32.mrf.mxu0
    %v315 = vadd.f32 %v150, %v314
    %v316 = vpop.f32.mrf.mxu0
    %v317 = vadd.f32 %v150, %v316
    %v318 = vpop.f32.mrf.mxu0
    %v319 = vadd.f32 %v155, %v318
    %v320 = vpop.f32.mrf.mxu0
    %v321 = vadd.f32 %v155, %v320
    %322 = vmatprep.mubr.bf16.mxu0 0
    %323 = vmatmul.mubr.bf16.gmra.mxu0 %v182
    %v324 = vpop.f32.mrf.mxu0
    %v325 = vadd.f32 %v160, %v324
    %v326 = vpop.f32.mrf.mxu0
    %v327 = vadd.f32 %v160, %v326
    %v328 = vpop.f32.mrf.mxu0
    %v329 = vadd.f32 %v165, %v328
    %v330 = vpop.f32.mrf.mxu0
    %v331 = vadd.f32 %v165, %v330
    %332 = vdwg.mxu0
    %333 = vmatprep.subr.bf16.mxu0 0
    %334 = vmatpush1.bf16.xpose.msra.mxu0 %v254
    %335 = vmatprep.subr.bf16.mxu0 0
    %336 = vmatpush1.bf16.xpose.msra.mxu0 %v251
    %337 = vmatprep.subr.bf16.mxu0 0
    %338 = vmatpush1.bf16.xpose.msra.mxu0 %v248
    %339 = vmatprep.subr.bf16.mxu0 0
    %340 = vmatpush1.bf16.xpose.msra.mxu0 %v245
    %341 = vmatprep.subr.bf16.mxu0 0
    %342 = vmatpush1.bf16.xpose.msra.mxu0 %v242
    %343 = vmatprep.subr.bf16.mxu0 0
    %344 = vmatpush1.bf16.xpose.msra.mxu0 %v239
    %345 = vmatprep.subr.bf16.mxu0 0
    %346 = vmatpush1.bf16.xpose.msra.mxu0 %v236
    %347 = vmatprep.subr.bf16.mxu0 0
    %348 = vmatpush1.bf16.xpose.msra.mxu0 %v233
    %349 = vmatprep.subr.bf16.mxu0 0
    %350 = vmatpush2.bf16.xpose.msra.mxu0 %v278
    %351 = vmatprep.subr.bf16.mxu0 0
    %352 = vmatpush2.bf16.xpose.msra.mxu0 %v275
    %353 = vmatprep.subr.bf16.mxu0 0
    %354 = vmatpush2.bf16.xpose.msra.mxu0 %v272
    %355 = vmatprep.subr.bf16.mxu0 0
    %356 = vmatpush2.bf16.xpose.msra.mxu0 %v269
    %357 = vmatprep.subr.bf16.mxu0 0
    %358 = vmatpush2.bf16.xpose.msra.mxu0 %v266
    %359 = vmatprep.subr.bf16.mxu0 0
    %360 = vmatpush2.bf16.xpose.msra.mxu0 %v263
    %361 = vmatprep.subr.bf16.mxu0 0
    %362 = vmatpush2.bf16.xpose.msra.mxu0 %v260
    %363 = vmatprep.subr.bf16.mxu0 0
    %364 = vmatpush2.bf16.xpose.msra.mxu0 %v257
    %365 = vmatprep.mubr.bf16.mxu0 0
    %366 = vmatmul.mubr.bf16.gmra.mxu0 %v179
    %v367 = vpop.f32.mrf.mxu0
    %v368 = vadd.f32 %v150, %v367
    %v369 = vpop.f32.mrf.mxu0
    %v370 = vadd.f32 %v150, %v369
    %v371 = vpop.f32.mrf.mxu0
    %v372 = vadd.f32 %v155, %v371
    %v373 = vpop.f32.mrf.mxu0
    %v374 = vadd.f32 %v155, %v373
    %375 = vmatprep.mubr.bf16.mxu0 0
    %376 = vmatmul.mubr.bf16.gmra.mxu0 %v182
    %v377 = vpop.f32.mrf.mxu0
    %v378 = vadd.f32 %v160, %v377
    %v379 = vpop.f32.mrf.mxu0
    %v380 = vadd.f32 %v160, %v379
    %v381 = vpop.f32.mrf.mxu0
    %v382 = vadd.f32 %v165, %v381
    %v383 = vpop.f32.mrf.mxu0
    %v384 = vadd.f32 %v165, %v383
    %385 = vdwg.mxu0
    %v386 = vpack.c.bf16 %v319, %v315
    %v387 = vpack.c.bf16 %v321, %v317
    %v388 = vpack.c.bf16 %v372, %v368
    %v389 = vpack.c.bf16 %v374, %v370
    %v390 = vpack.c.bf16 %v329, %v325
    %v391 = vpack.c.bf16 %v331, %v327
    %v392 = vpack.c.bf16 %v382, %v378
    %v393 = vpack.c.bf16 %v384, %v380
    %vm394 = vcmp.ge.bf16.partialorder %v386, 0
    %vm395 = vcmp.ge.bf16.partialorder %v387, 0
    %vm396 = vcmp.ge.bf16.partialorder %v388, 0
    %vm397 = vcmp.ge.bf16.partialorder %v389, 0
    %vm398 = vcmp.ge.bf16.partialorder %v390, 0
    %vm399 = vcmp.ge.bf16.partialorder %v391, 0
    %vm400 = vcmp.ge.bf16.partialorder %v392, 0
    %vm401 = vcmp.ge.bf16.partialorder %v393, 0
    %v402 = vmul.bf16 %v386, 1009007652
    %v403 = vmul.bf16 %v387, 1009007652
    %v404 = vmul.bf16 %v388, 1009007652
    %v405 = vmul.bf16 %v389, 1009007652
    %v406 = vmul.bf16 %v390, 1009007652
    %v407 = vmul.bf16 %v391, 1009007652
    %v408 = vmul.bf16 %v392, 1009007652
    %v409 = vmul.bf16 %v393, 1009007652
    %v410 = vsel %vm394, %v386, %v402
    %v411 = vsel %vm395, %v387, %v403
    %v412 = vsel %vm396, %v388, %v404
    %v413 = vsel %vm397, %v389, %v405
    %v414 = vsel %vm398, %v390, %v406
    %v415 = vsel %vm399, %v391, %v407
    %v416 = vsel %vm400, %v392, %v408
    %v417 = vsel %vm401, %v393, %v409
    %v418 = vld [vmem:[%s3] sm:$0xf]
    %v419 = vld [vmem:[%s3 + $0x4] sm:$0xf]
    %v420 = vld [vmem:[%s3 + $0x8] sm:$0xf]
    %v421 = vld [vmem:[%s3 + $0xc] sm:$0xf]
    %v422 = vld [vmem:[%s3 + $0x10] sm:$0xf]
    %v423 = vld [vmem:[%s3 + $0x14] sm:$0xf]
    %v424 = vld [vmem:[%s3 + $0x18] sm:$0xf]
    %v425 = vld [vmem:[%s3 + $0x1c] sm:$0xf]
    %v426 = vld [vmem:[%s4] sm:$0xff]
    %v427 = vld [vmem:[%s4 + $0x8] sm:$0xff]
    %v428 = vld [vmem:[%s4 + $0x10] sm:$0xff]
    %v429 = vld [vmem:[%s4 + $0x18] sm:$0xff]
    %v430 = vld [vmem:[%s4 + $0x20] sm:$0xff]
    %v431 = vld [vmem:[%s4 + $0x28] sm:$0xff]
    %v432 = vld [vmem:[%s4 + $0x30] sm:$0xff]
    %v433 = vld [vmem:[%s4 + $0x38] sm:$0xff]
    %435 = vset.pattern.permute.xlu0 0
    %436 = vperm.xlu0 %435, %v426
    %v437 = vpop.permute.xlu0 %436
    %440 = vset.pattern.permute.xlu0 0
    %441 = vperm.xlu0 %440, %v427
    %v442 = vpop.permute.xlu0 %441
    %445 = vset.pattern.permute.xlu0 0
    %446 = vperm.xlu0 %445, %v428
    %v447 = vpop.permute.xlu0 %446
    %450 = vset.pattern.permute.xlu0 0
    %451 = vperm.xlu0 %450, %v429
    %v452 = vpop.permute.xlu0 %451
    %455 = vset.pattern.permute.xlu0 0
    %456 = vperm.xlu0 %455, %v430
    %v457 = vpop.permute.xlu0 %456
    %460 = vset.pattern.permute.xlu0 0
    %461 = vperm.xlu0 %460, %v431
    %v462 = vpop.permute.xlu0 %461
    %465 = vset.pattern.permute.xlu0 0
    %466 = vperm.xlu0 %465, %v432
    %v467 = vpop.permute.xlu0 %466
    %470 = vset.pattern.permute.xlu0 0
    %471 = vperm.xlu0 %470, %v433
    %v472 = vpop.permute.xlu0 %471
    %v482 = vunpack.c.l.b16 %v418
    %v483 = vunpack.c.l.b16 %v419
    %v484 = vunpack.c.l.b16 %v420
    %v485 = vunpack.c.l.b16 %v421
    %v486 = vunpack.c.l.b16 %v422
    %v487 = vunpack.c.l.b16 %v423
    %v488 = vunpack.c.l.b16 %v424
    %v489 = vunpack.c.l.b16 %v425
    %v490 = vpack.c.b16 %v483, %v482
    %v491 = vpack.c.b16 %v485, %v484
    %v492 = vpack.c.b16 %v487, %v486
    %v493 = vpack.c.b16 %v489, %v488
    %vm494 = vcmask 261120
    %v496 = vsel %vm494, %v490, 0
    %v499 = vsel %vm494, %v491, 0
    %v502 = vsel %vm494, %v492, 0
    %v505 = vsel %vm494, %v493, 0
    %507 = vmatprep.subr.bf16.mxu0 0
    %508 = vmatpush1.bf16.msra.mxu0 0
    %509 = vmatprep.subr.bf16.mxu0 0
    %510 = vmatpush1.bf16.msra.mxu0 0
    %511 = vmatprep.subr.bf16.mxu0 0
    %512 = vmatpush1.bf16.msra.mxu0 0
    %513 = vmatprep.subr.bf16.mxu0 0
    %514 = vmatpush1.bf16.msra.mxu0 0
    %515 = vmatprep.subr.bf16.mxu0 0
    %516 = vmatpush1.bf16.msra.mxu0 0
    %517 = vmatprep.subr.bf16.mxu0 0
    %518 = vmatpush1.bf16.msra.mxu0 0
    %519 = vmatprep.subr.bf16.mxu0 %v415
    %520 = vmatpush1.bf16.msra.mxu0 %v414
    %521 = vmatprep.subr.bf16.mxu0 %v411
    %522 = vmatpush1.bf16.msra.mxu0 %v410
    %523 = vmatprep.subr.bf16.mxu0 0
    %524 = vmatpush2.bf16.msra.mxu0 0
    %525 = vmatprep.subr.bf16.mxu0 0
    %526 = vmatpush2.bf16.msra.mxu0 0
    %527 = vmatprep.subr.bf16.mxu0 0
    %528 = vmatpush2.bf16.msra.mxu0 0
    %529 = vmatprep.subr.bf16.mxu0 0
    %530 = vmatpush2.bf16.msra.mxu0 0
    %531 = vmatprep.subr.bf16.mxu0 0
    %532 = vmatpush2.bf16.msra.mxu0 0
    %533 = vmatprep.subr.bf16.mxu0 0
    %534 = vmatpush2.bf16.msra.mxu0 0
    %535 = vmatprep.subr.bf16.mxu0 0
    %536 = vmatpush2.bf16.msra.mxu0 0
    %537 = vmatprep.subr.bf16.mxu0 0
    %538 = vmatpush2.bf16.msra.mxu0 0
    %539 = vmatprep.mubr.bf16.mxu0 0
    %540 = vmatmul.mubr.bf16.gmra.mxu0 %v496
    %v541 = vpop.f32.mrf.mxu0
    %v542 = vadd.f32 %v437, %v541
    %v543 = vpop.f32.mrf.mxu0
    %v544 = vadd.f32 %v437, %v543
    %v545 = vpop.f32.mrf.mxu0
    %v546 = vadd.f32 %v442, %v545
    %v547 = vpop.f32.mrf.mxu0
    %v548 = vadd.f32 %v442, %v547
    %549 = vmatprep.mubr.bf16.mxu0 0
    %550 = vmatmul.mubr.bf16.gmra.mxu0 %v499
    %v551 = vpop.f32.mrf.mxu0
    %v552 = vadd.f32 %v447, %v551
    %v553 = vpop.f32.mrf.mxu0
    %v554 = vadd.f32 %v447, %v553
    %v555 = vpop.f32.mrf.mxu0
    %v556 = vadd.f32 %v452, %v555
    %v557 = vpop.f32.mrf.mxu0
    %v558 = vadd.f32 %v452, %v557
    %559 = vmatprep.mubr.bf16.mxu0 0
    %560 = vmatmul.mubr.bf16.gmra.mxu0 %v502
    %v561 = vpop.f32.mrf.mxu0
    %v562 = vadd.f32 %v457, %v561
    %v563 = vpop.f32.mrf.mxu0
    %v564 = vadd.f32 %v457, %v563
    %v565 = vpop.f32.mrf.mxu0
    %v566 = vadd.f32 %v462, %v565
    %v567 = vpop.f32.mrf.mxu0
    %v568 = vadd.f32 %v462, %v567
    %569 = vmatprep.mubr.bf16.mxu0 0
    %570 = vmatmul.mubr.bf16.gmra.mxu0 %v505
    %v571 = vpop.f32.mrf.mxu0
    %v572 = vadd.f32 %v467, %v571
    %v573 = vpop.f32.mrf.mxu0
    %v574 = vadd.f32 %v467, %v573
    %v575 = vpop.f32.mrf.mxu0
    %v576 = vadd.f32 %v472, %v575
    %v577 = vpop.f32.mrf.mxu0
    %v578 = vadd.f32 %v472, %v577
    %579 = vdwg.mxu0
    %580 = vmatprep.subr.bf16.mxu0 0
    %581 = vmatpush1.bf16.msra.mxu0 0
    %582 = vmatprep.subr.bf16.mxu0 0
    %583 = vmatpush1.bf16.msra.mxu0 0
    %584 = vmatprep.subr.bf16.mxu0 0
    %585 = vmatpush1.bf16.msra.mxu0 0
    %586 = vmatprep.subr.bf16.mxu0 0
    %587 = vmatpush1.bf16.msra.mxu0 0
    %588 = vmatprep.subr.bf16.mxu0 0
    %589 = vmatpush1.bf16.msra.mxu0 0
    %590 = vmatprep.subr.bf16.mxu0 0
    %591 = vmatpush1.bf16.msra.mxu0 0
    %592 = vmatprep.subr.bf16.mxu0 %v417
    %593 = vmatpush1.bf16.msra.mxu0 %v416
    %594 = vmatprep.subr.bf16.mxu0 %v413
    %595 = vmatpush1.bf16.msra.mxu0 %v412
    %596 = vmatprep.subr.bf16.mxu0 0
    %597 = vmatpush2.bf16.msra.mxu0 0
    %598 = vmatprep.subr.bf16.mxu0 0
    %599 = vmatpush2.bf16.msra.mxu0 0
    %600 = vmatprep.subr.bf16.mxu0 0
    %601 = vmatpush2.bf16.msra.mxu0 0
    %602 = vmatprep.subr.bf16.mxu0 0
    %603 = vmatpush2.bf16.msra.mxu0 0
    %604 = vmatprep.subr.bf16.mxu0 0
    %605 = vmatpush2.bf16.msra.mxu0 0
    %606 = vmatprep.subr.bf16.mxu0 0
    %607 = vmatpush2.bf16.msra.mxu0 0
    %608 = vmatprep.subr.bf16.mxu0 0
    %609 = vmatpush2.bf16.msra.mxu0 0
    %610 = vmatprep.subr.bf16.mxu0 0
    %611 = vmatpush2.bf16.msra.mxu0 0
    %612 = vmatprep.mubr.bf16.mxu0 0
    %613 = vmatmul.mubr.bf16.gmra.mxu0 %v496
    %v614 = vpop.f32.mrf.mxu0
    %v615 = vadd.f32 %v437, %v614
    %v616 = vpop.f32.mrf.mxu0
    %v617 = vadd.f32 %v437, %v616
    %v618 = vpop.f32.mrf.mxu0
    %v619 = vadd.f32 %v442, %v618
    %v620 = vpop.f32.mrf.mxu0
    %v621 = vadd.f32 %v442, %v620
    %622 = vmatprep.mubr.bf16.mxu0 0
    %623 = vmatmul.mubr.bf16.gmra.mxu0 %v499
    %v624 = vpop.f32.mrf.mxu0
    %v625 = vadd.f32 %v447, %v624
    %v626 = vpop.f32.mrf.mxu0
    %v627 = vadd.f32 %v447, %v626
    %v628 = vpop.f32.mrf.mxu0
    %v629 = vadd.f32 %v452, %v628
    %v630 = vpop.f32.mrf.mxu0
    %v631 = vadd.f32 %v452, %v630
    %632 = vmatprep.mubr.bf16.mxu0 0
    %633 = vmatmul.mubr.bf16.gmra.mxu0 %v502
    %v634 = vpop.f32.mrf.mxu0
    %v635 = vadd.f32 %v457, %v634
    %v636 = vpop.f32.mrf.mxu0
    %v637 = vadd.f32 %v457, %v636
    %v638 = vpop.f32.mrf.mxu0
    %v639 = vadd.f32 %v462, %v638
    %v640 = vpop.f32.mrf.mxu0
    %v641 = vadd.f32 %v462, %v640
    %642 = vmatprep.mubr.bf16.mxu0 0
    %643 = vmatmul.mubr.bf16.gmra.mxu0 %v505
    %v644 = vpop.f32.mrf.mxu0
    %v645 = vadd.f32 %v467, %v644
    %v646 = vpop.f32.mrf.mxu0
    %v647 = vadd.f32 %v467, %v646
    %v648 = vpop.f32.mrf.mxu0
    %v649 = vadd.f32 %v472, %v648
    %v650 = vpop.f32.mrf.mxu0
    %v651 = vadd.f32 %v472, %v650
    %652 = vdwg.mxu0
    %v653 = vpack.c.bf16 %v546, %v542
    %v654 = vpack.c.bf16 %v548, %v544
    %v655 = vpack.c.bf16 %v619, %v615
    %v656 = vpack.c.bf16 %v621, %v617
    %v657 = vpack.c.bf16 %v556, %v552
    %v658 = vpack.c.bf16 %v558, %v554
    %v659 = vpack.c.bf16 %v629, %v625
    %v660 = vpack.c.bf16 %v631, %v627
    %v661 = vpack.c.bf16 %v566, %v562
    %v662 = vpack.c.bf16 %v568, %v564
    %v663 = vpack.c.bf16 %v639, %v635
    %v664 = vpack.c.bf16 %v641, %v637
    %v665 = vpack.c.bf16 %v576, %v572
    %v666 = vpack.c.bf16 %v578, %v574
    %v667 = vpack.c.bf16 %v649, %v645
    %v668 = vpack.c.bf16 %v651, %v647
    %vm669 = vcmp.ge.bf16.partialorder %v653, 0
    %vm670 = vcmp.ge.bf16.partialorder %v654, 0
    %vm671 = vcmp.ge.bf16.partialorder %v655, 0
    %vm672 = vcmp.ge.bf16.partialorder %v656, 0
    %vm673 = vcmp.ge.bf16.partialorder %v657, 0
    %vm674 = vcmp.ge.bf16.partialorder %v658, 0
    %vm675 = vcmp.ge.bf16.partialorder %v659, 0
    %vm676 = vcmp.ge.bf16.partialorder %v660, 0
    %vm677 = vcmp.ge.bf16.partialorder %v661, 0
    %vm678 = vcmp.ge.bf16.partialorder %v662, 0
    %vm679 = vcmp.ge.bf16.partialorder %v663, 0
    %vm680 = vcmp.ge.bf16.partialorder %v664, 0
    %vm681 = vcmp.ge.bf16.partialorder %v665, 0
    %vm682 = vcmp.ge.bf16.partialorder %v666, 0
    %vm683 = vcmp.ge.bf16.partialorder %v667, 0
    %vm684 = vcmp.ge.bf16.partialorder %v668, 0
    %v685 = vmul.bf16 %v653, 1009007652
    %v686 = vmul.bf16 %v654, 1009007652
    %v687 = vmul.bf16 %v655, 1009007652
    %v688 = vmul.bf16 %v656, 1009007652
    %v689 = vmul.bf16 %v657, 1009007652
    %v690 = vmul.bf16 %v658, 1009007652
    %v691 = vmul.bf16 %v659, 1009007652
    %v692 = vmul.bf16 %v660, 1009007652
    %v693 = vmul.bf16 %v661, 1009007652
    %v694 = vmul.bf16 %v662, 1009007652
    %v695 = vmul.bf16 %v663, 1009007652
    %v696 = vmul.bf16 %v664, 1009007652
    %v697 = vmul.bf16 %v665, 1009007652
    %v698 = vmul.bf16 %v666, 1009007652
    %v699 = vmul.bf16 %v667, 1009007652
    %v700 = vmul.bf16 %v668, 1009007652
    %v701 = vsel %vm669, %v653, %v685
    %v702 = vsel %vm670, %v654, %v686
    %v703 = vsel %vm671, %v655, %v687
    %v704 = vsel %vm672, %v656, %v688
    %v705 = vsel %vm673, %v657, %v689
    %v706 = vsel %vm674, %v658, %v690
    %v707 = vsel %vm675, %v659, %v691
    %v708 = vsel %vm676, %v660, %v692
    %v709 = vsel %vm677, %v661, %v693
    %v710 = vsel %vm678, %v662, %v694
    %v711 = vsel %vm679, %v663, %v695
    %v712 = vsel %vm680, %v664, %v696
    %v713 = vsel %vm681, %v665, %v697
    %v714 = vsel %vm682, %v666, %v698
    %v715 = vsel %vm683, %v667, %v699
    %v716 = vsel %vm684, %v668, %v700
    %v717 = vld [vmem:[%s5] sm:$0xf]
    %v718 = vld [vmem:[%s5 + $0x4] sm:$0xf]
    %v719 = vld [vmem:[%s5 + $0x8] sm:$0xf]
    %v720 = vld [vmem:[%s5 + $0xc] sm:$0xf]
    %v721 = vld [vmem:[%s5 + $0x10] sm:$0xf]
    %v722 = vld [vmem:[%s5 + $0x14] sm:$0xf]
    %v723 = vld [vmem:[%s5 + $0x18] sm:$0xf]
    %v724 = vld [vmem:[%s5 + $0x1c] sm:$0xf]
    %v725 = vld [vmem:[%s5 + $0x20] sm:$0xf]
    %v726 = vld [vmem:[%s5 + $0x24] sm:$0xf]
    %v727 = vld [vmem:[%s5 + $0x28] sm:$0xf]
    %v728 = vld [vmem:[%s5 + $0x2c] sm:$0xf]
    %v729 = vld [vmem:[%s5 + $0x30] sm:$0xf]
    %v730 = vld [vmem:[%s5 + $0x34] sm:$0xf]
    %v731 = vld [vmem:[%s5 + $0x38] sm:$0xf]
    %v732 = vld [vmem:[%s5 + $0x3c] sm:$0xf]
    %v733 = vld [vmem:[%s6] sm:$0xff]
    %v734 = vld [vmem:[%s6 + $0x8] sm:$0xff]
    %v735 = vld [vmem:[%s6 + $0x10] sm:$0xff]
    %v736 = vld [vmem:[%s6 + $0x18] sm:$0xff]
    %v737 = vld [vmem:[%s6 + $0x20] sm:$0xff]
    %v738 = vld [vmem:[%s6 + $0x28] sm:$0xff]
    %v739 = vld [vmem:[%s6 + $0x30] sm:$0xff]
    %v740 = vld [vmem:[%s6 + $0x38] sm:$0xff]
    %v741 = vld [vmem:[%s6 + $0x40] sm:$0xff]
    %v742 = vld [vmem:[%s6 + $0x48] sm:$0xff]
    %v743 = vld [vmem:[%s6 + $0x50] sm:$0xff]
    %v744 = vld [vmem:[%s6 + $0x58] sm:$0xff]
    %v745 = vld [vmem:[%s6 + $0x60] sm:$0xff]
    %v746 = vld [vmem:[%s6 + $0x68] sm:$0xff]
    %v747 = vld [vmem:[%s6 + $0x70] sm:$0xff]
    %v748 = vld [vmem:[%s6 + $0x78] sm:$0xff]
    %750 = vset.pattern.permute.xlu0 0
    %751 = vperm.xlu0 %750, %v733
    %v752 = vpop.permute.xlu0 %751
    %755 = vset.pattern.permute.xlu0 0
    %756 = vperm.xlu0 %755, %v734
    %v757 = vpop.permute.xlu0 %756
    %760 = vset.pattern.permute.xlu0 0
    %761 = vperm.xlu0 %760, %v735
    %v762 = vpop.permute.xlu0 %761
    %765 = vset.pattern.permute.xlu0 0
    %766 = vperm.xlu0 %765, %v736
    %v767 = vpop.permute.xlu0 %766
    %770 = vset.pattern.permute.xlu0 0
    %771 = vperm.xlu0 %770, %v737
    %v772 = vpop.permute.xlu0 %771
    %775 = vset.pattern.permute.xlu0 0
    %776 = vperm.xlu0 %775, %v738
    %v777 = vpop.permute.xlu0 %776
    %780 = vset.pattern.permute.xlu0 0
    %781 = vperm.xlu0 %780, %v739
    %v782 = vpop.permute.xlu0 %781
    %785 = vset.pattern.permute.xlu0 0
    %786 = vperm.xlu0 %785, %v740
    %v787 = vpop.permute.xlu0 %786
    %790 = vset.pattern.permute.xlu0 0
    %791 = vperm.xlu0 %790, %v741
    %v792 = vpop.permute.xlu0 %791
    %795 = vset.pattern.permute.xlu0 0
    %796 = vperm.xlu0 %795, %v742
    %v797 = vpop.permute.xlu0 %796
    %800 = vset.pattern.permute.xlu0 0
    %801 = vperm.xlu0 %800, %v743
    %v802 = vpop.permute.xlu0 %801
    %805 = vset.pattern.permute.xlu0 0
    %806 = vperm.xlu0 %805, %v744
    %v807 = vpop.permute.xlu0 %806
    %810 = vset.pattern.permute.xlu0 0
    %811 = vperm.xlu0 %810, %v745
    %v812 = vpop.permute.xlu0 %811
    %815 = vset.pattern.permute.xlu0 0
    %816 = vperm.xlu0 %815, %v746
    %v817 = vpop.permute.xlu0 %816
    %820 = vset.pattern.permute.xlu0 0
    %821 = vperm.xlu0 %820, %v747
    %v822 = vpop.permute.xlu0 %821
    %825 = vset.pattern.permute.xlu0 0
    %826 = vperm.xlu0 %825, %v748
    %v827 = vpop.permute.xlu0 %826
    %v845 = vunpack.c.l.b16 %v717
    %v846 = vunpack.c.l.b16 %v718
    %v847 = vunpack.c.l.b16 %v719
    %v848 = vunpack.c.l.b16 %v720
    %v849 = vunpack.c.l.b16 %v721
    %v850 = vunpack.c.l.b16 %v722
    %v851 = vunpack.c.l.b16 %v723
    %v852 = vunpack.c.l.b16 %v724
    %v853 = vunpack.c.l.b16 %v725
    %v854 = vunpack.c.l.b16 %v726
    %v855 = vunpack.c.l.b16 %v727
    %v856 = vunpack.c.l.b16 %v728
    %v857 = vunpack.c.l.b16 %v729
    %v858 = vunpack.c.l.b16 %v730
    %v859 = vunpack.c.l.b16 %v731
    %v860 = vunpack.c.l.b16 %v732
    %v861 = vpack.c.b16 %v846, %v845
    %v862 = vpack.c.b16 %v848, %v847
    %v863 = vpack.c.b16 %v850, %v849
    %v864 = vpack.c.b16 %v852, %v851
    %v865 = vpack.c.b16 %v854, %v853
    %v866 = vpack.c.b16 %v856, %v855
    %v867 = vpack.c.b16 %v858, %v857
    %v868 = vpack.c.b16 %v860, %v859
    %vm869 = vcmask 523264
    %v871 = vsel %vm869, %v861, 0
    %v874 = vsel %vm869, %v862, 0
    %v877 = vsel %vm869, %v863, 0
    %v880 = vsel %vm869, %v864, 0
    %v883 = vsel %vm869, %v865, 0
    %v886 = vsel %vm869, %v866, 0
    %v889 = vsel %vm869, %v867, 0
    %v892 = vsel %vm869, %v868, 0
    %894 = vmatprep.subr.bf16.mxu0 0
    %895 = vmatpush1.bf16.msra.mxu0 0
    %896 = vmatprep.subr.bf16.mxu0 0
    %897 = vmatpush1.bf16.msra.mxu0 0
    %898 = vmatprep.subr.bf16.mxu0 0
    %899 = vmatpush1.bf16.msra.mxu0 0
    %900 = vmatprep.subr.bf16.mxu0 0
    %901 = vmatpush1.bf16.msra.mxu0 0
    %902 = vmatprep.subr.bf16.mxu0 %v714
    %903 = vmatpush1.bf16.msra.mxu0 %v713
    %904 = vmatprep.subr.bf16.mxu0 %v710
    %905 = vmatpush1.bf16.msra.mxu0 %v709
    %906 = vmatprep.subr.bf16.mxu0 %v706
    %907 = vmatpush1.bf16.msra.mxu0 %v705
    %908 = vmatprep.subr.bf16.mxu0 %v702
    %909 = vmatpush1.bf16.msra.mxu0 %v701
    %910 = vmatprep.subr.bf16.mxu0 0
    %911 = vmatpush2.bf16.msra.mxu0 0
    %912 = vmatprep.subr.bf16.mxu0 0
    %913 = vmatpush2.bf16.msra.mxu0 0
    %914 = vmatprep.subr.bf16.mxu0 0
    %915 = vmatpush2.bf16.msra.mxu0 0
    %916 = vmatprep.subr.bf16.mxu0 0
    %917 = vmatpush2.bf16.msra.mxu0 0
    %918 = vmatprep.subr.bf16.mxu0 0
    %919 = vmatpush2.bf16.msra.mxu0 0
    %920 = vmatprep.subr.bf16.mxu0 0
    %921 = vmatpush2.bf16.msra.mxu0 0
    %922 = vmatprep.subr.bf16.mxu0 0
    %923 = vmatpush2.bf16.msra.mxu0 0
    %924 = vmatprep.subr.bf16.mxu0 0
    %925 = vmatpush2.bf16.msra.mxu0 0
    %926 = vmatprep.mubr.bf16.mxu0 0
    %927 = vmatmul.mubr.bf16.gmra.mxu0 %v871
    %v928 = vpop.f32.mrf.mxu0
    %v929 = vadd.f32 %v752, %v928
    %v930 = vpop.f32.mrf.mxu0
    %v931 = vadd.f32 %v752, %v930
    %v932 = vpop.f32.mrf.mxu0
    %v933 = vadd.f32 %v757, %v932
    %v934 = vpop.f32.mrf.mxu0
    %v935 = vadd.f32 %v757, %v934
    %936 = vmatprep.mubr.bf16.mxu0 0
    %937 = vmatmul.mubr.bf16.gmra.mxu0 %v874
    %v938 = vpop.f32.mrf.mxu0
    %v939 = vadd.f32 %v762, %v938
    %v940 = vpop.f32.mrf.mxu0
    %v941 = vadd.f32 %v762, %v940
    %v942 = vpop.f32.mrf.mxu0
    %v943 = vadd.f32 %v767, %v942
    %v944 = vpop.f32.mrf.mxu0
    %v945 = vadd.f32 %v767, %v944
    %946 = vmatprep.mubr.bf16.mxu0 0
    %947 = vmatmul.mubr.bf16.gmra.mxu0 %v877
    %v948 = vpop.f32.mrf.mxu0
    %v949 = vadd.f32 %v772, %v948
    %v950 = vpop.f32.mrf.mxu0
    %v951 = vadd.f32 %v772, %v950
    %v952 = vpop.f32.mrf.mxu0
    %v953 = vadd.f32 %v777, %v952
    %v954 = vpop.f32.mrf.mxu0
    %v955 = vadd.f32 %v777, %v954
    %956 = vmatprep.mubr.bf16.mxu0 0
    %957 = vmatmul.mubr.bf16.gmra.mxu0 %v880
    %v958 = vpop.f32.mrf.mxu0
    %v959 = vadd.f32 %v782, %v958
    %v960 = vpop.f32.mrf.mxu0
    %v961 = vadd.f32 %v782, %v960
    %v962 = vpop.f32.mrf.mxu0
    %v963 = vadd.f32 %v787, %v962
    %v964 = vpop.f32.mrf.mxu0
    %v965 = vadd.f32 %v787, %v964
    %966 = vmatprep.mubr.bf16.mxu0 0
    %967 = vmatmul.mubr.bf16.gmra.mxu0 %v883
    %v968 = vpop.f32.mrf.mxu0
    %v969 = vadd.f32 %v792, %v968
    %v970 = vpop.f32.mrf.mxu0
    %v971 = vadd.f32 %v792, %v970
    %v972 = vpop.f32.mrf.mxu0
    %v973 = vadd.f32 %v797, %v972
    %v974 = vpop.f32.mrf.mxu0
    %v975 = vadd.f32 %v797, %v974
    %976 = vmatprep.mubr.bf16.mxu0 0
    %977 = vmatmul.mubr.bf16.gmra.mxu0 %v886
    %v978 = vpop.f32.mrf.mxu0
    %v979 = vadd.f32 %v802, %v978
    %v980 = vpop.f32.mrf.mxu0
    %v981 = vadd.f32 %v802, %v980
    %v982 = vpop.f32.mrf.mxu0
    %v983 = vadd.f32 %v807, %v982
    %v984 = vpop.f32.mrf.mxu0
    %v985 = vadd.f32 %v807, %v984
    %986 = vmatprep.mubr.bf16.mxu0 0
    %987 = vmatmul.mubr.bf16.gmra.mxu0 %v889
    %v988 = vpop.f32.mrf.mxu0
    %v989 = vadd.f32 %v812, %v988
    %v990 = vpop.f32.mrf.mxu0
    %v991 = vadd.f32 %v812, %v990
    %v992 = vpop.f32.mrf.mxu0
    %v993 = vadd.f32 %v817, %v992
    %v994 = vpop.f32.mrf.mxu0
    %v995 = vadd.f32 %v817, %v994
    %996 = vmatprep.mubr.bf16.mxu0 0
    %997 = vmatmul.mubr.bf16.gmra.mxu0 %v892
    %v998 = vpop.f32.mrf.mxu0
    %v999 = vadd.f32 %v822, %v998
    %v1000 = vpop.f32.mrf.mxu0
    %v1001 = vadd.f32 %v822, %v1000
    %v1002 = vpop.f32.mrf.mxu0
    %v1003 = vadd.f32 %v827, %v1002
    %v1004 = vpop.f32.mrf.mxu0
    %v1005 = vadd.f32 %v827, %v1004
    %1006 = vdwg.mxu0
    %1007 = vmatprep.subr.bf16.mxu0 0
    %1008 = vmatpush1.bf16.msra.mxu0 0
    %1009 = vmatprep.subr.bf16.mxu0 0
    %1010 = vmatpush1.bf16.msra.mxu0 0
    %1011 = vmatprep.subr.bf16.mxu0 0
    %1012 = vmatpush1.bf16.msra.mxu0 0
    %1013 = vmatprep.subr.bf16.mxu0 0
    %1014 = vmatpush1.bf16.msra.mxu0 0
    %1015 = vmatprep.subr.bf16.mxu0 %v716
    %1016 = vmatpush1.bf16.msra.mxu0 %v715
    %1017 = vmatprep.subr.bf16.mxu0 %v712
    %1018 = vmatpush1.bf16.msra.mxu0 %v711
    %1019 = vmatprep.subr.bf16.mxu0 %v708
    %1020 = vmatpush1.bf16.msra.mxu0 %v707
    %1021 = vmatprep.subr.bf16.mxu0 %v704
    %1022 = vmatpush1.bf16.msra.mxu0 %v703
    %1023 = vmatprep.subr.bf16.mxu0 0
    %1024 = vmatpush2.bf16.msra.mxu0 0
    %1025 = vmatprep.subr.bf16.mxu0 0
    %1026 = vmatpush2.bf16.msra.mxu0 0
    %1027 = vmatprep.subr.bf16.mxu0 0
    %1028 = vmatpush2.bf16.msra.mxu0 0
    %1029 = vmatprep.subr.bf16.mxu0 0
    %1030 = vmatpush2.bf16.msra.mxu0 0
    %1031 = vmatprep.subr.bf16.mxu0 0
    %1032 = vmatpush2.bf16.msra.mxu0 0
    %1033 = vmatprep.subr.bf16.mxu0 0
    %1034 = vmatpush2.bf16.msra.mxu0 0
    %1035 = vmatprep.subr.bf16.mxu0 0
    %1036 = vmatpush2.bf16.msra.mxu0 0
    %1037 = vmatprep.subr.bf16.mxu0 0
    %1038 = vmatpush2.bf16.msra.mxu0 0
    %1039 = vmatprep.mubr.bf16.mxu0 0
    %1040 = vmatmul.mubr.bf16.gmra.mxu0 %v871
    %v1041 = vpop.f32.mrf.mxu0
    %v1042 = vadd.f32 %v752, %v1041
    %v1043 = vpop.f32.mrf.mxu0
    %v1044 = vadd.f32 %v752, %v1043
    %v1045 = vpop.f32.mrf.mxu0
    %v1046 = vadd.f32 %v757, %v1045
    %v1047 = vpop.f32.mrf.mxu0
    %v1048 = vadd.f32 %v757, %v1047
    %1049 = vmatprep.mubr.bf16.mxu0 0
    %1050 = vmatmul.mubr.bf16.gmra.mxu0 %v874
    %v1051 = vpop.f32.mrf.mxu0
    %v1052 = vadd.f32 %v762, %v1051
    %v1053 = vpop.f32.mrf.mxu0
    %v1054 = vadd.f32 %v762, %v1053
    %v1055 = vpop.f32.mrf.mxu0
    %v1056 = vadd.f32 %v767, %v1055
    %v1057 = vpop.f32.mrf.mxu0
    %v1058 = vadd.f32 %v767, %v1057
    %1059 = vmatprep.mubr.bf16.mxu0 0
    %1060 = vmatmul.mubr.bf16.gmra.mxu0 %v877
    %v1061 = vpop.f32.mrf.mxu0
    %v1062 = vadd.f32 %v772, %v1061
    %v1063 = vpop.f32.mrf.mxu0
    %v1064 = vadd.f32 %v772, %v1063
    %v1065 = vpop.f32.mrf.mxu0
    %v1066 = vadd.f32 %v777, %v1065
    %v1067 = vpop.f32.mrf.mxu0
    %v1068 = vadd.f32 %v777, %v1067
    %1069 = vmatprep.mubr.bf16.mxu0 0
    %1070 = vmatmul.mubr.bf16.gmra.mxu0 %v880
    %v1071 = vpop.f32.mrf.mxu0
    %v1072 = vadd.f32 %v782, %v1071
    %v1073 = vpop.f32.mrf.mxu0
    %v1074 = vadd.f32 %v782, %v1073
    %v1075 = vpop.f32.mrf.mxu0
    %v1076 = vadd.f32 %v787, %v1075
    %v1077 = vpop.f32.mrf.mxu0
    %v1078 = vadd.f32 %v787, %v1077
    %1079 = vmatprep.mubr.bf16.mxu0 0
    %1080 = vmatmul.mubr.bf16.gmra.mxu0 %v883
    %v1081 = vpop.f32.mrf.mxu0
    %v1082 = vadd.f32 %v792, %v1081
    %v1083 = vpop.f32.mrf.mxu0
    %v1084 = vadd.f32 %v792, %v1083
    %v1085 = vpop.f32.mrf.mxu0
    %v1086 = vadd.f32 %v797, %v1085
    %v1087 = vpop.f32.mrf.mxu0
    %v1088 = vadd.f32 %v797, %v1087
    %1089 = vmatprep.mubr.bf16.mxu0 0
    %1090 = vmatmul.mubr.bf16.gmra.mxu0 %v886
    %v1091 = vpop.f32.mrf.mxu0
    %v1092 = vadd.f32 %v802, %v1091
    %v1093 = vpop.f32.mrf.mxu0
    %v1094 = vadd.f32 %v802, %v1093
    %v1095 = vpop.f32.mrf.mxu0
    %v1096 = vadd.f32 %v807, %v1095
    %v1097 = vpop.f32.mrf.mxu0
    %v1098 = vadd.f32 %v807, %v1097
    %1099 = vmatprep.mubr.bf16.mxu0 0
    %1100 = vmatmul.mubr.bf16.gmra.mxu0 %v889
    %v1101 = vpop.f32.mrf.mxu0
    %v1102 = vadd.f32 %v812, %v1101
    %v1103 = vpop.f32.mrf.mxu0
    %v1104 = vadd.f32 %v812, %v1103
    %v1105 = vpop.f32.mrf.mxu0
    %v1106 = vadd.f32 %v817, %v1105
    %v1107 = vpop.f32.mrf.mxu0
    %v1108 = vadd.f32 %v817, %v1107
    %1109 = vmatprep.mubr.bf16.mxu0 0
    %1110 = vmatmul.mubr.bf16.gmra.mxu0 %v892
    %v1111 = vpop.f32.mrf.mxu0
    %v1112 = vadd.f32 %v822, %v1111
    %v1113 = vpop.f32.mrf.mxu0
    %v1114 = vadd.f32 %v822, %v1113
    %v1115 = vpop.f32.mrf.mxu0
    %v1116 = vadd.f32 %v827, %v1115
    %v1117 = vpop.f32.mrf.mxu0
    %v1118 = vadd.f32 %v827, %v1117
    %1119 = vdwg.mxu0
    %v1120 = vpack.c.bf16 %v933, %v929
    %v1121 = vpack.c.bf16 %v935, %v931
    %v1122 = vpack.c.bf16 %v1046, %v1042
    %v1123 = vpack.c.bf16 %v1048, %v1044
    %v1124 = vpack.c.bf16 %v943, %v939
    %v1125 = vpack.c.bf16 %v945, %v941
    %v1126 = vpack.c.bf16 %v1056, %v1052
    %v1127 = vpack.c.bf16 %v1058, %v1054
    %v1128 = vpack.c.bf16 %v953, %v949
    %v1129 = vpack.c.bf16 %v955, %v951
    %v1130 = vpack.c.bf16 %v1066, %v1062
    %v1131 = vpack.c.bf16 %v1068, %v1064
    %v1132 = vpack.c.bf16 %v963, %v959
    %v1133 = vpack.c.bf16 %v965, %v961
    %v1134 = vpack.c.bf16 %v1076, %v1072
    %v1135 = vpack.c.bf16 %v1078, %v1074
    %v1136 = vpack.c.bf16 %v973, %v969
    %v1137 = vpack.c.bf16 %v975, %v971
    %v1138 = vpack.c.bf16 %v1086, %v1082
    %v1139 = vpack.c.bf16 %v1088, %v1084
    %v1140 = vpack.c.bf16 %v983, %v979
    %v1141 = vpack.c.bf16 %v985, %v981
    %v1142 = vpack.c.bf16 %v1096, %v1092
    %v1143 = vpack.c.bf16 %v1098, %v1094
    %v1144 = vpack.c.bf16 %v993, %v989
    %v1145 = vpack.c.bf16 %v995, %v991
    %v1146 = vpack.c.bf16 %v1106, %v1102
    %v1147 = vpack.c.bf16 %v1108, %v1104
    %v1148 = vpack.c.bf16 %v1003, %v999
    %v1149 = vpack.c.bf16 %v1005, %v1001
    %v1150 = vpack.c.bf16 %v1116, %v1112
    %v1151 = vpack.c.bf16 %v1118, %v1114
    %vm1152 = vcmp.ge.bf16.partialorder %v1120, 0
    %vm1153 = vcmp.ge.bf16.partialorder %v1121, 0
    %vm1154 = vcmp.ge.bf16.partialorder %v1122, 0
    %vm1155 = vcmp.ge.bf16.partialorder %v1123, 0
    %vm1156 = vcmp.ge.bf16.partialorder %v1124, 0
    %vm1157 = vcmp.ge.bf16.partialorder %v1125, 0
    %vm1158 = vcmp.ge.bf16.partialorder %v1126, 0
    %vm1159 = vcmp.ge.bf16.partialorder %v1127, 0
    %vm1160 = vcmp.ge.bf16.partialorder %v1128, 0
    %vm1161 = vcmp.ge.bf16.partialorder %v1129, 0
    %vm1162 = vcmp.ge.bf16.partialorder %v1130, 0
    %vm1163 = vcmp.ge.bf16.partialorder %v1131, 0
    %vm1164 = vcmp.ge.bf16.partialorder %v1132, 0
    %vm1165 = vcmp.ge.bf16.partialorder %v1133, 0
    %vm1166 = vcmp.ge.bf16.partialorder %v1134, 0
    %vm1167 = vcmp.ge.bf16.partialorder %v1135, 0
    %vm1168 = vcmp.ge.bf16.partialorder %v1136, 0
    %vm1169 = vcmp.ge.bf16.partialorder %v1137, 0
    %vm1170 = vcmp.ge.bf16.partialorder %v1138, 0
    %vm1171 = vcmp.ge.bf16.partialorder %v1139, 0
    %vm1172 = vcmp.ge.bf16.partialorder %v1140, 0
    %vm1173 = vcmp.ge.bf16.partialorder %v1141, 0
    %vm1174 = vcmp.ge.bf16.partialorder %v1142, 0
    %vm1175 = vcmp.ge.bf16.partialorder %v1143, 0
    %vm1176 = vcmp.ge.bf16.partialorder %v1144, 0
    %vm1177 = vcmp.ge.bf16.partialorder %v1145, 0
    %vm1178 = vcmp.ge.bf16.partialorder %v1146, 0
    %vm1179 = vcmp.ge.bf16.partialorder %v1147, 0
    %vm1180 = vcmp.ge.bf16.partialorder %v1148, 0
    %vm1181 = vcmp.ge.bf16.partialorder %v1149, 0
    %vm1182 = vcmp.ge.bf16.partialorder %v1150, 0
    %vm1183 = vcmp.ge.bf16.partialorder %v1151, 0
    %v1184 = vmul.bf16 %v1120, 1009007652
    %v1185 = vmul.bf16 %v1121, 1009007652
    %v1186 = vmul.bf16 %v1122, 1009007652
    %v1187 = vmul.bf16 %v1123, 1009007652
    %v1188 = vmul.bf16 %v1124, 1009007652
    %v1189 = vmul.bf16 %v1125, 1009007652
    %v1190 = vmul.bf16 %v1126, 1009007652
    %v1191 = vmul.bf16 %v1127, 1009007652
    %v1192 = vmul.bf16 %v1128, 1009007652
    %v1193 = vmul.bf16 %v1129, 1009007652
    %v1194 = vmul.bf16 %v1130, 1009007652
    %v1195 = vmul.bf16 %v1131, 1009007652
    %v1196 = vmul.bf16 %v1132, 1009007652
    %v1197 = vmul.bf16 %v1133, 1009007652
    %v1198 = vmul.bf16 %v1134, 1009007652
    %v1199 = vmul.bf16 %v1135, 1009007652
    %v1200 = vmul.bf16 %v1136, 1009007652
    %v1201 = vmul.bf16 %v1137, 1009007652
    %v1202 = vmul.bf16 %v1138, 1009007652
    %v1203 = vmul.bf16 %v1139, 1009007652
    %v1204 = vmul.bf16 %v1140, 1009007652
    %v1205 = vmul.bf16 %v1141, 1009007652
    %v1206 = vmul.bf16 %v1142, 1009007652
    %v1207 = vmul.bf16 %v1143, 1009007652
    %v1208 = vmul.bf16 %v1144, 1009007652
    %v1209 = vmul.bf16 %v1145, 1009007652
    %v1210 = vmul.bf16 %v1146, 1009007652
    %v1211 = vmul.bf16 %v1147, 1009007652
    %v1212 = vmul.bf16 %v1148, 1009007652
    %v1213 = vmul.bf16 %v1149, 1009007652
    %v1214 = vmul.bf16 %v1150, 1009007652
    %v1215 = vmul.bf16 %v1151, 1009007652
    %v1216 = vsel %vm1152, %v1120, %v1184
    %v1217 = vsel %vm1153, %v1121, %v1185
    %v1218 = vsel %vm1154, %v1122, %v1186
    %v1219 = vsel %vm1155, %v1123, %v1187
    %v1220 = vsel %vm1156, %v1124, %v1188
    %v1221 = vsel %vm1157, %v1125, %v1189
    %v1222 = vsel %vm1158, %v1126, %v1190
    %v1223 = vsel %vm1159, %v1127, %v1191
    %v1224 = vsel %vm1160, %v1128, %v1192
    %v1225 = vsel %vm1161, %v1129, %v1193
    %v1226 = vsel %vm1162, %v1130, %v1194
    %v1227 = vsel %vm1163, %v1131, %v1195
    %v1228 = vsel %vm1164, %v1132, %v1196
    %v1229 = vsel %vm1165, %v1133, %v1197
    %v1230 = vsel %vm1166, %v1134, %v1198
    %v1231 = vsel %vm1167, %v1135, %v1199
    %v1232 = vsel %vm1168, %v1136, %v1200
    %v1233 = vsel %vm1169, %v1137, %v1201
    %v1234 = vsel %vm1170, %v1138, %v1202
    %v1235 = vsel %vm1171, %v1139, %v1203
    %v1236 = vsel %vm1172, %v1140, %v1204
    %v1237 = vsel %vm1173, %v1141, %v1205
    %v1238 = vsel %vm1174, %v1142, %v1206
    %v1239 = vsel %vm1175, %v1143, %v1207
    %v1240 = vsel %vm1176, %v1144, %v1208
    %v1241 = vsel %vm1177, %v1145, %v1209
    %v1242 = vsel %vm1178, %v1146, %v1210
    %v1243 = vsel %vm1179, %v1147, %v1211
    %v1244 = vsel %vm1180, %v1148, %v1212
    %v1245 = vsel %vm1181, %v1149, %v1213
    %v1246 = vsel %vm1182, %v1150, %v1214
    %v1247 = vsel %vm1183, %v1151, %v1215
    %v1248 = vld [vmem:[%s7] sm:$0xf]
    %v1249 = vld [vmem:[%s7 + $0x4] sm:$0xf]
    %v1250 = vld [vmem:[%s7 + $0x8] sm:$0xf]
    %v1251 = vld [vmem:[%s7 + $0xc] sm:$0xf]
    %v1252 = vld [vmem:[%s7 + $0x10] sm:$0xf]
    %v1253 = vld [vmem:[%s7 + $0x14] sm:$0xf]
    %v1254 = vld [vmem:[%s7 + $0x18] sm:$0xf]
    %v1255 = vld [vmem:[%s7 + $0x1c] sm:$0xf]
    %v1256 = vld [vmem:[%s7 + $0x20] sm:$0xf]
    %v1257 = vld [vmem:[%s7 + $0x24] sm:$0xf]
    %v1258 = vld [vmem:[%s7 + $0x28] sm:$0xf]
    %v1259 = vld [vmem:[%s7 + $0x2c] sm:$0xf]
    %v1260 = vld [vmem:[%s7 + $0x30] sm:$0xf]
    %v1261 = vld [vmem:[%s7 + $0x34] sm:$0xf]
    %v1262 = vld [vmem:[%s7 + $0x38] sm:$0xf]
    %v1263 = vld [vmem:[%s7 + $0x3c] sm:$0xf]
    %v1264 = vld [vmem:[%s7 + $0x40] sm:$0xf]
    %v1265 = vld [vmem:[%s7 + $0x44] sm:$0xf]
    %v1266 = vld [vmem:[%s7 + $0x48] sm:$0xf]
    %v1267 = vld [vmem:[%s7 + $0x4c] sm:$0xf]
    %v1268 = vld [vmem:[%s7 + $0x50] sm:$0xf]
    %v1269 = vld [vmem:[%s7 + $0x54] sm:$0xf]
    %v1270 = vld [vmem:[%s7 + $0x58] sm:$0xf]
    %v1271 = vld [vmem:[%s7 + $0x5c] sm:$0xf]
    %v1272 = vld [vmem:[%s7 + $0x60] sm:$0xf]
    %v1273 = vld [vmem:[%s7 + $0x64] sm:$0xf]
    %v1274 = vld [vmem:[%s7 + $0x68] sm:$0xf]
    %v1275 = vld [vmem:[%s7 + $0x6c] sm:$0xf]
    %v1276 = vld [vmem:[%s7 + $0x70] sm:$0xf]
    %v1277 = vld [vmem:[%s7 + $0x74] sm:$0xf]
    %v1278 = vld [vmem:[%s7 + $0x78] sm:$0xf]
    %v1279 = vld [vmem:[%s7 + $0x7c] sm:$0xf]
    %v1280 = vld [vmem:[%s8] sm:$0xff]
    %v1281 = vld [vmem:[%s8 + $0x8] sm:$0xff]
    %v1282 = vld [vmem:[%s8 + $0x10] sm:$0xff]
    %v1283 = vld [vmem:[%s8 + $0x18] sm:$0xff]
    %v1284 = vld [vmem:[%s8 + $0x20] sm:$0xff]
    %v1285 = vld [vmem:[%s8 + $0x28] sm:$0xff]
    %v1286 = vld [vmem:[%s8 + $0x30] sm:$0xff]
    %v1287 = vld [vmem:[%s8 + $0x38] sm:$0xff]
    %v1288 = vld [vmem:[%s8 + $0x40] sm:$0xff]
    %v1289 = vld [vmem:[%s8 + $0x48] sm:$0xff]
    %v1290 = vld [vmem:[%s8 + $0x50] sm:$0xff]
    %v1291 = vld [vmem:[%s8 + $0x58] sm:$0xff]
    %v1292 = vld [vmem:[%s8 + $0x60] sm:$0xff]
    %v1293 = vld [vmem:[%s8 + $0x68] sm:$0xff]
    %v1294 = vld [vmem:[%s8 + $0x70] sm:$0xff]
    %v1295 = vld [vmem:[%s8 + $0x78] sm:$0xff]
    %v1296 = vld [vmem:[%s8 + $0x80] sm:$0xff]
    %v1297 = vld [vmem:[%s8 + $0x88] sm:$0xff]
    %v1298 = vld [vmem:[%s8 + $0x90] sm:$0xff]
    %v1299 = vld [vmem:[%s8 + $0x98] sm:$0xff]
    %v1300 = vld [vmem:[%s8 + $0xa0] sm:$0xff]
    %v1301 = vld [vmem:[%s8 + $0xa8] sm:$0xff]
    %v1302 = vld [vmem:[%s8 + $0xb0] sm:$0xff]
    %v1303 = vld [vmem:[%s8 + $0xb8] sm:$0xff]
    %v1304 = vld [vmem:[%s8 + $0xc0] sm:$0xff]
    %v1305 = vld [vmem:[%s8 + $0xc8] sm:$0xff]
    %v1306 = vld [vmem:[%s8 + $0xd0] sm:$0xff]
    %v1307 = vld [vmem:[%s8 + $0xd8] sm:$0xff]
    %v1308 = vld [vmem:[%s8 + $0xe0] sm:$0xff]
    %v1309 = vld [vmem:[%s8 + $0xe8] sm:$0xff]
    %v1310 = vld [vmem:[%s8 + $0xf0] sm:$0xff]
    %v1311 = vld [vmem:[%s8 + $0xf8] sm:$0xff]
    %1313 = vset.pattern.permute.xlu0 0
    %1314 = vperm.xlu0 %1313, %v1280
    %v1315 = vpop.permute.xlu0 %1314
    %1318 = vset.pattern.permute.xlu0 0
    %1319 = vperm.xlu0 %1318, %v1281
    %v1320 = vpop.permute.xlu0 %1319
    %1323 = vset.pattern.permute.xlu0 0
    %1324 = vperm.xlu0 %1323, %v1282
    %v1325 = vpop.permute.xlu0 %1324
    %1328 = vset.pattern.permute.xlu0 0
    %1329 = vperm.xlu0 %1328, %v1283
    %v1330 = vpop.permute.xlu0 %1329
    %1333 = vset.pattern.permute.xlu0 0
    %1334 = vperm.xlu0 %1333, %v1284
    %v1335 = vpop.permute.xlu0 %1334
    %1338 = vset.pattern.permute.xlu0 0
    %1339 = vperm.xlu0 %1338, %v1285
    %v1340 = vpop.permute.xlu0 %1339
    %1343 = vset.pattern.permute.xlu0 0
    %1344 = vperm.xlu0 %1343, %v1286
    %v1345 = vpop.permute.xlu0 %1344
    %1348 = vset.pattern.permute.xlu0 0
    %1349 = vperm.xlu0 %1348, %v1287
    %v1350 = vpop.permute.xlu0 %1349
    %1353 = vset.pattern.permute.xlu0 0
    %1354 = vperm.xlu0 %1353, %v1288
    %v1355 = vpop.permute.xlu0 %1354
    %1358 = vset.pattern.permute.xlu0 0
    %1359 = vperm.xlu0 %1358, %v1289
    %v1360 = vpop.permute.xlu0 %1359
    %1363 = vset.pattern.permute.xlu0 0
    %1364 = vperm.xlu0 %1363, %v1290
    %v1365 = vpop.permute.xlu0 %1364
    %1368 = vset.pattern.permute.xlu0 0
    %1369 = vperm.xlu0 %1368, %v1291
    %v1370 = vpop.permute.xlu0 %1369
    %1373 = vset.pattern.permute.xlu0 0
    %1374 = vperm.xlu0 %1373, %v1292
    %v1375 = vpop.permute.xlu0 %1374
    %1378 = vset.pattern.permute.xlu0 0
    %1379 = vperm.xlu0 %1378, %v1293
    %v1380 = vpop.permute.xlu0 %1379
    %1383 = vset.pattern.permute.xlu0 0
    %1384 = vperm.xlu0 %1383, %v1294
    %v1385 = vpop.permute.xlu0 %1384
    %1388 = vset.pattern.permute.xlu0 0
    %1389 = vperm.xlu0 %1388, %v1295
    %v1390 = vpop.permute.xlu0 %1389
    %1393 = vset.pattern.permute.xlu0 0
    %1394 = vperm.xlu0 %1393, %v1296
    %v1395 = vpop.permute.xlu0 %1394
    %1398 = vset.pattern.permute.xlu0 0
    %1399 = vperm.xlu0 %1398, %v1297
    %v1400 = vpop.permute.xlu0 %1399
    %1403 = vset.pattern.permute.xlu0 0
    %1404 = vperm.xlu0 %1403, %v1298
    %v1405 = vpop.permute.xlu0 %1404
    %1408 = vset.pattern.permute.xlu0 0
    %1409 = vperm.xlu0 %1408, %v1299
    %v1410 = vpop.permute.xlu0 %1409
    %1413 = vset.pattern.permute.xlu0 0
    %1414 = vperm.xlu0 %1413, %v1300
    %v1415 = vpop.permute.xlu0 %1414
    %1418 = vset.pattern.permute.xlu0 0
    %1419 = vperm.xlu0 %1418, %v1301
    %v1420 = vpop.permute.xlu0 %1419
    %1423 = vset.pattern.permute.xlu0 0
    %1424 = vperm.xlu0 %1423, %v1302
    %v1425 = vpop.permute.xlu0 %1424
    %1428 = vset.pattern.permute.xlu0 0
    %1429 = vperm.xlu0 %1428, %v1303
    %v1430 = vpop.permute.xlu0 %1429
    %1433 = vset.pattern.permute.xlu0 0
    %1434 = vperm.xlu0 %1433, %v1304
    %v1435 = vpop.permute.xlu0 %1434
    %1438 = vset.pattern.permute.xlu0 0
    %1439 = vperm.xlu0 %1438, %v1305
    %v1440 = vpop.permute.xlu0 %1439
    %1443 = vset.pattern.permute.xlu0 0
    %1444 = vperm.xlu0 %1443, %v1306
    %v1445 = vpop.permute.xlu0 %1444
    %1448 = vset.pattern.permute.xlu0 0
    %1449 = vperm.xlu0 %1448, %v1307
    %v1450 = vpop.permute.xlu0 %1449
    %1453 = vset.pattern.permute.xlu0 0
    %1454 = vperm.xlu0 %1453, %v1308
    %v1455 = vpop.permute.xlu0 %1454
    %1458 = vset.pattern.permute.xlu0 0
    %1459 = vperm.xlu0 %1458, %v1309
    %v1460 = vpop.permute.xlu0 %1459
    %1463 = vset.pattern.permute.xlu0 0
    %1464 = vperm.xlu0 %1463, %v1310
    %v1465 = vpop.permute.xlu0 %1464
    %1468 = vset.pattern.permute.xlu0 0
    %1469 = vperm.xlu0 %1468, %v1311
    %v1470 = vpop.permute.xlu0 %1469
    %v1504 = vunpack.c.l.b16 %v1248
    %v1505 = vunpack.c.l.b16 %v1249
    %v1506 = vunpack.c.l.b16 %v1250
    %v1507 = vunpack.c.l.b16 %v1251
    %v1508 = vunpack.c.l.b16 %v1252
    %v1509 = vunpack.c.l.b16 %v1253
    %v1510 = vunpack.c.l.b16 %v1254
    %v1511 = vunpack.c.l.b16 %v1255
    %v1512 = vunpack.c.l.b16 %v1256
    %v1513 = vunpack.c.l.b16 %v1257
    %v1514 = vunpack.c.l.b16 %v1258
    %v1515 = vunpack.c.l.b16 %v1259
    %v1516 = vunpack.c.l.b16 %v1260
    %v1517 = vunpack.c.l.b16 %v1261
    %v1518 = vunpack.c.l.b16 %v1262
    %v1519 = vunpack.c.l.b16 %v1263
    %v1520 = vunpack.c.l.b16 %v1264
    %v1521 = vunpack.c.l.b16 %v1265
    %v1522 = vunpack.c.l.b16 %v1266
    %v1523 = vunpack.c.l.b16 %v1267
    %v1524 = vunpack.c.l.b16 %v1268
    %v1525 = vunpack.c.l.b16 %v1269
    %v1526 = vunpack.c.l.b16 %v1270
    %v1527 = vunpack.c.l.b16 %v1271
    %v1528 = vunpack.c.l.b16 %v1272
    %v1529 = vunpack.c.l.b16 %v1273
    %v1530 = vunpack.c.l.b16 %v1274
    %v1531 = vunpack.c.l.b16 %v1275
    %v1532 = vunpack.c.l.b16 %v1276
    %v1533 = vunpack.c.l.b16 %v1277
    %v1534 = vunpack.c.l.b16 %v1278
    %v1535 = vunpack.c.l.b16 %v1279
    %v1536 = vpack.c.b16 %v1505, %v1504
    %v1537 = vpack.c.b16 %v1507, %v1506
    %v1538 = vpack.c.b16 %v1509, %v1508
    %v1539 = vpack.c.b16 %v1511, %v1510
    %v1540 = vpack.c.b16 %v1513, %v1512
    %v1541 = vpack.c.b16 %v1515, %v1514
    %v1542 = vpack.c.b16 %v1517, %v1516
    %v1543 = vpack.c.b16 %v1519, %v1518
    %v1544 = vpack.c.b16 %v1521, %v1520
    %v1545 = vpack.c.b16 %v1523, %v1522
    %v1546 = vpack.c.b16 %v1525, %v1524
    %v1547 = vpack.c.b16 %v1527, %v1526
    %v1548 = vpack.c.b16 %v1529, %v1528
    %v1549 = vpack.c.b16 %v1531, %v1530
    %v1550 = vpack.c.b16 %v1533, %v1532
    %v1551 = vpack.c.b16 %v1535, %v1534
    %1568 = vmatprep.subr.bf16.mxu0 %v1245
    %1569 = vmatpush1.bf16.msra.mxu0 %v1244
    %1570 = vmatprep.subr.bf16.mxu0 %v1241
    %1571 = vmatpush1.bf16.msra.mxu0 %v1240
    %1572 = vmatprep.subr.bf16.mxu0 %v1237
    %1573 = vmatpush1.bf16.msra.mxu0 %v1236
    %1574 = vmatprep.subr.bf16.mxu0 %v1233
    %1575 = vmatpush1.bf16.msra.mxu0 %v1232
    %1576 = vmatprep.subr.bf16.mxu0 %v1229
    %1577 = vmatpush1.bf16.msra.mxu0 %v1228
    %1578 = vmatprep.subr.bf16.mxu0 %v1225
    %1579 = vmatpush1.bf16.msra.mxu0 %v1224
    %1580 = vmatprep.subr.bf16.mxu0 %v1221
    %1581 = vmatpush1.bf16.msra.mxu0 %v1220
    %1582 = vmatprep.subr.bf16.mxu0 %v1217
    %1583 = vmatpush1.bf16.msra.mxu0 %v1216
    %1584 = vmatprep.subr.bf16.mxu0 0
    %1585 = vmatpush2.bf16.msra.mxu0 0
    %1586 = vmatprep.subr.bf16.mxu0 0
    %1587 = vmatpush2.bf16.msra.mxu0 0
    %1588 = vmatprep.subr.bf16.mxu0 0
    %1589 = vmatpush2.bf16.msra.mxu0 0
    %1590 = vmatprep.subr.bf16.mxu0 0
    %1591 = vmatpush2.bf16.msra.mxu0 0
    %1592 = vmatprep.subr.bf16.mxu0 0
    %1593 = vmatpush2.bf16.msra.mxu0 0
    %1594 = vmatprep.subr.bf16.mxu0 0
    %1595 = vmatpush2.bf16.msra.mxu0 0
    %1596 = vmatprep.subr.bf16.mxu0 0
    %1597 = vmatpush2.bf16.msra.mxu0 0
    %1598 = vmatprep.subr.bf16.mxu0 0
    %1599 = vmatpush2.bf16.msra.mxu0 0
    %1600 = vmatprep.mubr.bf16.mxu0 0
    %1601 = vmatmul.mubr.bf16.gmra.mxu0 %v1536
    %v1602 = vpop.f32.mrf.mxu0
    %v1603 = vadd.f32 %v1315, %v1602
    %v1604 = vpop.f32.mrf.mxu0
    %v1605 = vadd.f32 %v1315, %v1604
    %v1606 = vpop.f32.mrf.mxu0
    %v1607 = vadd.f32 %v1320, %v1606
    %v1608 = vpop.f32.mrf.mxu0
    %v1609 = vadd.f32 %v1320, %v1608
    %1610 = vmatprep.mubr.bf16.mxu0 0
    %1611 = vmatmul.mubr.bf16.gmra.mxu0 %v1537
    %v1612 = vpop.f32.mrf.mxu0
    %v1613 = vadd.f32 %v1325, %v1612
    %v1614 = vpop.f32.mrf.mxu0
    %v1615 = vadd.f32 %v1325, %v1614
    %v1616 = vpop.f32.mrf.mxu0
    %v1617 = vadd.f32 %v1330, %v1616
    %v1618 = vpop.f32.mrf.mxu0
    %v1619 = vadd.f32 %v1330, %v1618
    %1620 = vmatprep.mubr.bf16.mxu0 0
    %1621 = vmatmul.mubr.bf16.gmra.mxu0 %v1538
    %v1622 = vpop.f32.mrf.mxu0
    %v1623 = vadd.f32 %v1335, %v1622
    %v1624 = vpop.f32.mrf.mxu0
    %v1625 = vadd.f32 %v1335, %v1624
    %v1626 = vpop.f32.mrf.mxu0
    %v1627 = vadd.f32 %v1340, %v1626
    %v1628 = vpop.f32.mrf.mxu0
    %v1629 = vadd.f32 %v1340, %v1628
    %1630 = vmatprep.mubr.bf16.mxu0 0
    %1631 = vmatmul.mubr.bf16.gmra.mxu0 %v1539
    %v1632 = vpop.f32.mrf.mxu0
    %v1633 = vadd.f32 %v1345, %v1632
    %v1634 = vpop.f32.mrf.mxu0
    %v1635 = vadd.f32 %v1345, %v1634
    %v1636 = vpop.f32.mrf.mxu0
    %v1637 = vadd.f32 %v1350, %v1636
    %v1638 = vpop.f32.mrf.mxu0
    %v1639 = vadd.f32 %v1350, %v1638
    %1640 = vmatprep.mubr.bf16.mxu0 0
    %1641 = vmatmul.mubr.bf16.gmra.mxu0 %v1540
    %v1642 = vpop.f32.mrf.mxu0
    %v1643 = vadd.f32 %v1355, %v1642
    %v1644 = vpop.f32.mrf.mxu0
    %v1645 = vadd.f32 %v1355, %v1644
    %v1646 = vpop.f32.mrf.mxu0
    %v1647 = vadd.f32 %v1360, %v1646
    %v1648 = vpop.f32.mrf.mxu0
    %v1649 = vadd.f32 %v1360, %v1648
    %1650 = vmatprep.mubr.bf16.mxu0 0
    %1651 = vmatmul.mubr.bf16.gmra.mxu0 %v1541
    %v1652 = vpop.f32.mrf.mxu0
    %v1653 = vadd.f32 %v1365, %v1652
    %v1654 = vpop.f32.mrf.mxu0
    %v1655 = vadd.f32 %v1365, %v1654
    %v1656 = vpop.f32.mrf.mxu0
    %v1657 = vadd.f32 %v1370, %v1656
    %v1658 = vpop.f32.mrf.mxu0
    %v1659 = vadd.f32 %v1370, %v1658
    %1660 = vmatprep.mubr.bf16.mxu0 0
    %1661 = vmatmul.mubr.bf16.gmra.mxu0 %v1542
    %v1662 = vpop.f32.mrf.mxu0
    %v1663 = vadd.f32 %v1375, %v1662
    %v1664 = vpop.f32.mrf.mxu0
    %v1665 = vadd.f32 %v1375, %v1664
    %v1666 = vpop.f32.mrf.mxu0
    %v1667 = vadd.f32 %v1380, %v1666
    %v1668 = vpop.f32.mrf.mxu0
    %v1669 = vadd.f32 %v1380, %v1668
    %1670 = vmatprep.mubr.bf16.mxu0 0
    %1671 = vmatmul.mubr.bf16.gmra.mxu0 %v1543
    %v1672 = vpop.f32.mrf.mxu0
    %v1673 = vadd.f32 %v1385, %v1672
    %v1674 = vpop.f32.mrf.mxu0
    %v1675 = vadd.f32 %v1385, %v1674
    %v1676 = vpop.f32.mrf.mxu0
    %v1677 = vadd.f32 %v1390, %v1676
    %v1678 = vpop.f32.mrf.mxu0
    %v1679 = vadd.f32 %v1390, %v1678
    %1680 = vmatprep.mubr.bf16.mxu0 0
    %1681 = vmatmul.mubr.bf16.gmra.mxu0 %v1544
    %v1682 = vpop.f32.mrf.mxu0
    %v1683 = vadd.f32 %v1395, %v1682
    %v1684 = vpop.f32.mrf.mxu0
    %v1685 = vadd.f32 %v1395, %v1684
    %v1686 = vpop.f32.mrf.mxu0
    %v1687 = vadd.f32 %v1400, %v1686
    %v1688 = vpop.f32.mrf.mxu0
    %v1689 = vadd.f32 %v1400, %v1688
    %1690 = vmatprep.mubr.bf16.mxu0 0
    %1691 = vmatmul.mubr.bf16.gmra.mxu0 %v1545
    %v1692 = vpop.f32.mrf.mxu0
    %v1693 = vadd.f32 %v1405, %v1692
    %v1694 = vpop.f32.mrf.mxu0
    %v1695 = vadd.f32 %v1405, %v1694
    %v1696 = vpop.f32.mrf.mxu0
    %v1697 = vadd.f32 %v1410, %v1696
    %v1698 = vpop.f32.mrf.mxu0
    %v1699 = vadd.f32 %v1410, %v1698
    %1700 = vmatprep.mubr.bf16.mxu0 0
    %1701 = vmatmul.mubr.bf16.gmra.mxu0 %v1546
    %v1702 = vpop.f32.mrf.mxu0
    %v1703 = vadd.f32 %v1415, %v1702
    %v1704 = vpop.f32.mrf.mxu0
    %v1705 = vadd.f32 %v1415, %v1704
    %v1706 = vpop.f32.mrf.mxu0
    %v1707 = vadd.f32 %v1420, %v1706
    %v1708 = vpop.f32.mrf.mxu0
    %v1709 = vadd.f32 %v1420, %v1708
    %1710 = vmatprep.mubr.bf16.mxu0 0
    %1711 = vmatmul.mubr.bf16.gmra.mxu0 %v1547
    %v1712 = vpop.f32.mrf.mxu0
    %v1713 = vadd.f32 %v1425, %v1712
    %v1714 = vpop.f32.mrf.mxu0
    %v1715 = vadd.f32 %v1425, %v1714
    %v1716 = vpop.f32.mrf.mxu0
    %v1717 = vadd.f32 %v1430, %v1716
    %v1718 = vpop.f32.mrf.mxu0
    %v1719 = vadd.f32 %v1430, %v1718
    %1720 = vmatprep.mubr.bf16.mxu0 0
    %1721 = vmatmul.mubr.bf16.gmra.mxu0 %v1548
    %v1722 = vpop.f32.mrf.mxu0
    %v1723 = vadd.f32 %v1435, %v1722
    %v1724 = vpop.f32.mrf.mxu0
    %v1725 = vadd.f32 %v1435, %v1724
    %v1726 = vpop.f32.mrf.mxu0
    %v1727 = vadd.f32 %v1440, %v1726
    %v1728 = vpop.f32.mrf.mxu0
    %v1729 = vadd.f32 %v1440, %v1728
    %1730 = vmatprep.mubr.bf16.mxu0 0
    %1731 = vmatmul.mubr.bf16.gmra.mxu0 %v1549
    %v1732 = vpop.f32.mrf.mxu0
    %v1733 = vadd.f32 %v1445, %v1732
    %v1734 = vpop.f32.mrf.mxu0
    %v1735 = vadd.f32 %v1445, %v1734
    %v1736 = vpop.f32.mrf.mxu0
    %v1737 = vadd.f32 %v1450, %v1736
    %v1738 = vpop.f32.mrf.mxu0
    %v1739 = vadd.f32 %v1450, %v1738
    %1740 = vmatprep.mubr.bf16.mxu0 0
    %1741 = vmatmul.mubr.bf16.gmra.mxu0 %v1550
    %v1742 = vpop.f32.mrf.mxu0
    %v1743 = vadd.f32 %v1455, %v1742
    %v1744 = vpop.f32.mrf.mxu0
    %v1745 = vadd.f32 %v1455, %v1744
    %v1746 = vpop.f32.mrf.mxu0
    %v1747 = vadd.f32 %v1460, %v1746
    %v1748 = vpop.f32.mrf.mxu0
    %v1749 = vadd.f32 %v1460, %v1748
    %1750 = vmatprep.mubr.bf16.mxu0 0
    %1751 = vmatmul.mubr.bf16.gmra.mxu0 %v1551
    %v1752 = vpop.f32.mrf.mxu0
    %v1753 = vadd.f32 %v1465, %v1752
    %v1754 = vpop.f32.mrf.mxu0
    %v1755 = vadd.f32 %v1465, %v1754
    %v1756 = vpop.f32.mrf.mxu0
    %v1757 = vadd.f32 %v1470, %v1756
    %v1758 = vpop.f32.mrf.mxu0
    %v1759 = vadd.f32 %v1470, %v1758
    %1760 = vdwg.mxu0
    %1761 = vmatprep.subr.bf16.mxu0 %v1247
    %1762 = vmatpush1.bf16.msra.mxu0 %v1246
    %1763 = vmatprep.subr.bf16.mxu0 %v1243
    %1764 = vmatpush1.bf16.msra.mxu0 %v1242
    %1765 = vmatprep.subr.bf16.mxu0 %v1239
    %1766 = vmatpush1.bf16.msra.mxu0 %v1238
    %1767 = vmatprep.subr.bf16.mxu0 %v1235
    %1768 = vmatpush1.bf16.msra.mxu0 %v1234
    %1769 = vmatprep.subr.bf16.mxu0 %v1231
    %1770 = vmatpush1.bf16.msra.mxu0 %v1230
    %1771 = vmatprep.subr.bf16.mxu0 %v1227
    %1772 = vmatpush1.bf16.msra.mxu0 %v1226
    %1773 = vmatprep.subr.bf16.mxu0 %v1223
    %1774 = vmatpush1.bf16.msra.mxu0 %v1222
    %1775 = vmatprep.subr.bf16.mxu0 %v1219
    %1776 = vmatpush1.bf16.msra.mxu0 %v1218
    %1777 = vmatprep.subr.bf16.mxu0 0
    %1778 = vmatpush2.bf16.msra.mxu0 0
    %1779 = vmatprep.subr.bf16.mxu0 0
    %1780 = vmatpush2.bf16.msra.mxu0 0
    %1781 = vmatprep.subr.bf16.mxu0 0
    %1782 = vmatpush2.bf16.msra.mxu0 0
    %1783 = vmatprep.subr.bf16.mxu0 0
    %1784 = vmatpush2.bf16.msra.mxu0 0
    %1785 = vmatprep.subr.bf16.mxu0 0
    %1786 = vmatpush2.bf16.msra.mxu0 0
    %1787 = vmatprep.subr.bf16.mxu0 0
    %1788 = vmatpush2.bf16.msra.mxu0 0
    %1789 = vmatprep.subr.bf16.mxu0 0
    %1790 = vmatpush2.bf16.msra.mxu0 0
    %1791 = vmatprep.subr.bf16.mxu0 0
    %1792 = vmatpush2.bf16.msra.mxu0 0
    %1793 = vmatprep.mubr.bf16.mxu0 0
    %1794 = vmatmul.mubr.bf16.gmra.mxu0 %v1536
    %v1795 = vpop.f32.mrf.mxu0
    %v1796 = vadd.f32 %v1315, %v1795
    %v1797 = vpop.f32.mrf.mxu0
    %v1798 = vadd.f32 %v1315, %v1797
    %v1799 = vpop.f32.mrf.mxu0
    %v1800 = vadd.f32 %v1320, %v1799
    %v1801 = vpop.f32.mrf.mxu0
    %v1802 = vadd.f32 %v1320, %v1801
    %1803 = vmatprep.mubr.bf16.mxu0 0
    %1804 = vmatmul.mubr.bf16.gmra.mxu0 %v1537
    %v1805 = vpop.f32.mrf.mxu0
    %v1806 = vadd.f32 %v1325, %v1805
    %v1807 = vpop.f32.mrf.mxu0
    %v1808 = vadd.f32 %v1325, %v1807
    %v1809 = vpop.f32.mrf.mxu0
    %v1810 = vadd.f32 %v1330, %v1809
    %v1811 = vpop.f32.mrf.mxu0
    %v1812 = vadd.f32 %v1330, %v1811
    %1813 = vmatprep.mubr.bf16.mxu0 0
    %1814 = vmatmul.mubr.bf16.gmra.mxu0 %v1538
    %v1815 = vpop.f32.mrf.mxu0
    %v1816 = vadd.f32 %v1335, %v1815
    %v1817 = vpop.f32.mrf.mxu0
    %v1818 = vadd.f32 %v1335, %v1817
    %v1819 = vpop.f32.mrf.mxu0
    %v1820 = vadd.f32 %v1340, %v1819
    %v1821 = vpop.f32.mrf.mxu0
    %v1822 = vadd.f32 %v1340, %v1821
    %1823 = vmatprep.mubr.bf16.mxu0 0
    %1824 = vmatmul.mubr.bf16.gmra.mxu0 %v1539
    %v1825 = vpop.f32.mrf.mxu0
    %v1826 = vadd.f32 %v1345, %v1825
    %v1827 = vpop.f32.mrf.mxu0
    %v1828 = vadd.f32 %v1345, %v1827
    %v1829 = vpop.f32.mrf.mxu0
    %v1830 = vadd.f32 %v1350, %v1829
    %v1831 = vpop.f32.mrf.mxu0
    %v1832 = vadd.f32 %v1350, %v1831
    %1833 = vmatprep.mubr.bf16.mxu0 0
    %1834 = vmatmul.mubr.bf16.gmra.mxu0 %v1540
    %v1835 = vpop.f32.mrf.mxu0
    %v1836 = vadd.f32 %v1355, %v1835
    %v1837 = vpop.f32.mrf.mxu0
    %v1838 = vadd.f32 %v1355, %v1837
    %v1839 = vpop.f32.mrf.mxu0
    %v1840 = vadd.f32 %v1360, %v1839
    %v1841 = vpop.f32.mrf.mxu0
    %v1842 = vadd.f32 %v1360, %v1841
    %1843 = vmatprep.mubr.bf16.mxu0 0
    %1844 = vmatmul.mubr.bf16.gmra.mxu0 %v1541
    %v1845 = vpop.f32.mrf.mxu0
    %v1846 = vadd.f32 %v1365, %v1845
    %v1847 = vpop.f32.mrf.mxu0
    %v1848 = vadd.f32 %v1365, %v1847
    %v1849 = vpop.f32.mrf.mxu0
    %v1850 = vadd.f32 %v1370, %v1849
    %v1851 = vpop.f32.mrf.mxu0
    %v1852 = vadd.f32 %v1370, %v1851
    %1853 = vmatprep.mubr.bf16.mxu0 0
    %1854 = vmatmul.mubr.bf16.gmra.mxu0 %v1542
    %v1855 = vpop.f32.mrf.mxu0
    %v1856 = vadd.f32 %v1375, %v1855
    %v1857 = vpop.f32.mrf.mxu0
    %v1858 = vadd.f32 %v1375, %v1857
    %v1859 = vpop.f32.mrf.mxu0
    %v1860 = vadd.f32 %v1380, %v1859
    %v1861 = vpop.f32.mrf.mxu0
    %v1862 = vadd.f32 %v1380, %v1861
    %1863 = vmatprep.mubr.bf16.mxu0 0
    %1864 = vmatmul.mubr.bf16.gmra.mxu0 %v1543
    %v1865 = vpop.f32.mrf.mxu0
    %v1866 = vadd.f32 %v1385, %v1865
    %v1867 = vpop.f32.mrf.mxu0
    %v1868 = vadd.f32 %v1385, %v1867
    %v1869 = vpop.f32.mrf.mxu0
    %v1870 = vadd.f32 %v1390, %v1869
    %v1871 = vpop.f32.mrf.mxu0
    %v1872 = vadd.f32 %v1390, %v1871
    %1873 = vmatprep.mubr.bf16.mxu0 0
    %1874 = vmatmul.mubr.bf16.gmra.mxu0 %v1544
    %v1875 = vpop.f32.mrf.mxu0
    %v1876 = vadd.f32 %v1395, %v1875
    %v1877 = vpop.f32.mrf.mxu0
    %v1878 = vadd.f32 %v1395, %v1877
    %v1879 = vpop.f32.mrf.mxu0
    %v1880 = vadd.f32 %v1400, %v1879
    %v1881 = vpop.f32.mrf.mxu0
    %v1882 = vadd.f32 %v1400, %v1881
    %1883 = vmatprep.mubr.bf16.mxu0 0
    %1884 = vmatmul.mubr.bf16.gmra.mxu0 %v1545
    %v1885 = vpop.f32.mrf.mxu0
    %v1886 = vadd.f32 %v1405, %v1885
    %v1887 = vpop.f32.mrf.mxu0
    %v1888 = vadd.f32 %v1405, %v1887
    %v1889 = vpop.f32.mrf.mxu0
    %v1890 = vadd.f32 %v1410, %v1889
    %v1891 = vpop.f32.mrf.mxu0
    %v1892 = vadd.f32 %v1410, %v1891
    %1893 = vmatprep.mubr.bf16.mxu0 0
    %1894 = vmatmul.mubr.bf16.gmra.mxu0 %v1546
    %v1895 = vpop.f32.mrf.mxu0
    %v1896 = vadd.f32 %v1415, %v1895
    %v1897 = vpop.f32.mrf.mxu0
    %v1898 = vadd.f32 %v1415, %v1897
    %v1899 = vpop.f32.mrf.mxu0
    %v1900 = vadd.f32 %v1420, %v1899
    %v1901 = vpop.f32.mrf.mxu0
    %v1902 = vadd.f32 %v1420, %v1901
    %1903 = vmatprep.mubr.bf16.mxu0 0
    %1904 = vmatmul.mubr.bf16.gmra.mxu0 %v1547
    %v1905 = vpop.f32.mrf.mxu0
    %v1906 = vadd.f32 %v1425, %v1905
    %v1907 = vpop.f32.mrf.mxu0
    %v1908 = vadd.f32 %v1425, %v1907
    %v1909 = vpop.f32.mrf.mxu0
    %v1910 = vadd.f32 %v1430, %v1909
    %v1911 = vpop.f32.mrf.mxu0
    %v1912 = vadd.f32 %v1430, %v1911
    %1913 = vmatprep.mubr.bf16.mxu0 0
    %1914 = vmatmul.mubr.bf16.gmra.mxu0 %v1548
    %v1915 = vpop.f32.mrf.mxu0
    %v1916 = vadd.f32 %v1435, %v1915
    %v1917 = vpop.f32.mrf.mxu0
    %v1918 = vadd.f32 %v1435, %v1917
    %v1919 = vpop.f32.mrf.mxu0
    %v1920 = vadd.f32 %v1440, %v1919
    %v1921 = vpop.f32.mrf.mxu0
    %v1922 = vadd.f32 %v1440, %v1921
    %1923 = vmatprep.mubr.bf16.mxu0 0
    %1924 = vmatmul.mubr.bf16.gmra.mxu0 %v1549
    %v1925 = vpop.f32.mrf.mxu0
    %v1926 = vadd.f32 %v1445, %v1925
    %v1927 = vpop.f32.mrf.mxu0
    %v1928 = vadd.f32 %v1445, %v1927
    %v1929 = vpop.f32.mrf.mxu0
    %v1930 = vadd.f32 %v1450, %v1929
    %v1931 = vpop.f32.mrf.mxu0
    %v1932 = vadd.f32 %v1450, %v1931
    %1933 = vmatprep.mubr.bf16.mxu0 0
    %1934 = vmatmul.mubr.bf16.gmra.mxu0 %v1550
    %v1935 = vpop.f32.mrf.mxu0
    %v1936 = vadd.f32 %v1455, %v1935
    %v1937 = vpop.f32.mrf.mxu0
    %v1938 = vadd.f32 %v1455, %v1937
    %v1939 = vpop.f32.mrf.mxu0
    %v1940 = vadd.f32 %v1460, %v1939
    %v1941 = vpop.f32.mrf.mxu0
    %v1942 = vadd.f32 %v1460, %v1941
    %1943 = vmatprep.mubr.bf16.mxu0 0
    %1944 = vmatmul.mubr.bf16.gmra.mxu0 %v1551
    %v1945 = vpop.f32.mrf.mxu0
    %v1946 = vadd.f32 %v1465, %v1945
    %v1947 = vpop.f32.mrf.mxu0
    %v1948 = vadd.f32 %v1465, %v1947
    %v1949 = vpop.f32.mrf.mxu0
    %v1950 = vadd.f32 %v1470, %v1949
    %v1951 = vpop.f32.mrf.mxu0
    %v1952 = vadd.f32 %v1470, %v1951
    %1953 = vdwg.mxu0
    %v1954 = vpack.c.bf16 %v1607, %v1603
    %v1955 = vpack.c.bf16 %v1609, %v1605
    %v1956 = vpack.c.bf16 %v1800, %v1796
    %v1957 = vpack.c.bf16 %v1802, %v1798
    %v1958 = vpack.c.bf16 %v1617, %v1613
    %v1959 = vpack.c.bf16 %v1619, %v1615
    %v1960 = vpack.c.bf16 %v1810, %v1806
    %v1961 = vpack.c.bf16 %v1812, %v1808
    %v1962 = vpack.c.bf16 %v1627, %v1623
    %v1963 = vpack.c.bf16 %v1629, %v1625
    %v1964 = vpack.c.bf16 %v1820, %v1816
    %v1965 = vpack.c.bf16 %v1822, %v1818
    %v1966 = vpack.c.bf16 %v1637, %v1633
    %v1967 = vpack.c.bf16 %v1639, %v1635
    %v1968 = vpack.c.bf16 %v1830, %v1826
    %v1969 = vpack.c.bf16 %v1832, %v1828
    %v1970 = vpack.c.bf16 %v1647, %v1643
    %v1971 = vpack.c.bf16 %v1649, %v1645
    %v1972 = vpack.c.bf16 %v1840, %v1836
    %v1973 = vpack.c.bf16 %v1842, %v1838
    %v1974 = vpack.c.bf16 %v1657, %v1653
    %v1975 = vpack.c.bf16 %v1659, %v1655
    %v1976 = vpack.c.bf16 %v1850, %v1846
    %v1977 = vpack.c.bf16 %v1852, %v1848
    %v1978 = vpack.c.bf16 %v1667, %v1663
    %v1979 = vpack.c.bf16 %v1669, %v1665
    %v1980 = vpack.c.bf16 %v1860, %v1856
    %v1981 = vpack.c.bf16 %v1862, %v1858
    %v1982 = vpack.c.bf16 %v1677, %v1673
    %v1983 = vpack.c.bf16 %v1679, %v1675
    %v1984 = vpack.c.bf16 %v1870, %v1866
    %v1985 = vpack.c.bf16 %v1872, %v1868
    %v1986 = vpack.c.bf16 %v1687, %v1683
    %v1987 = vpack.c.bf16 %v1689, %v1685
    %v1988 = vpack.c.bf16 %v1880, %v1876
    %v1989 = vpack.c.bf16 %v1882, %v1878
    %v1990 = vpack.c.bf16 %v1697, %v1693
    %v1991 = vpack.c.bf16 %v1699, %v1695
    %v1992 = vpack.c.bf16 %v1890, %v1886
    %v1993 = vpack.c.bf16 %v1892, %v1888
    %v1994 = vpack.c.bf16 %v1707, %v1703
    %v1995 = vpack.c.bf16 %v1709, %v1705
    %v1996 = vpack.c.bf16 %v1900, %v1896
    %v1997 = vpack.c.bf16 %v1902, %v1898
    %v1998 = vpack.c.bf16 %v1717, %v1713
    %v1999 = vpack.c.bf16 %v1719, %v1715
    %v2000 = vpack.c.bf16 %v1910, %v1906
    %v2001 = vpack.c.bf16 %v1912, %v1908
    %v2002 = vpack.c.bf16 %v1727, %v1723
    %v2003 = vpack.c.bf16 %v1729, %v1725
    %v2004 = vpack.c.bf16 %v1920, %v1916
    %v2005 = vpack.c.bf16 %v1922, %v1918
    %v2006 = vpack.c.bf16 %v1737, %v1733
    %v2007 = vpack.c.bf16 %v1739, %v1735
    %v2008 = vpack.c.bf16 %v1930, %v1926
    %v2009 = vpack.c.bf16 %v1932, %v1928
    %v2010 = vpack.c.bf16 %v1747, %v1743
    %v2011 = vpack.c.bf16 %v1749, %v1745
    %v2012 = vpack.c.bf16 %v1940, %v1936
    %v2013 = vpack.c.bf16 %v1942, %v1938
    %v2014 = vpack.c.bf16 %v1757, %v1753
    %v2015 = vpack.c.bf16 %v1759, %v1755
    %v2016 = vpack.c.bf16 %v1950, %v1946
    %v2017 = vpack.c.bf16 %v1952, %v1948
    %vm2018 = vcmp.ge.bf16.partialorder %v1954, 0
    %vm2019 = vcmp.ge.bf16.partialorder %v1955, 0
    %vm2020 = vcmp.ge.bf16.partialorder %v1956, 0
    %vm2021 = vcmp.ge.bf16.partialorder %v1957, 0
    %vm2022 = vcmp.ge.bf16.partialorder %v1958, 0
    %vm2023 = vcmp.ge.bf16.partialorder %v1959, 0
    %vm2024 = vcmp.ge.bf16.partialorder %v1960, 0
    %vm2025 = vcmp.ge.bf16.partialorder %v1961, 0
    %vm2026 = vcmp.ge.bf16.partialorder %v1962, 0
    %vm2027 = vcmp.ge.bf16.partialorder %v1963, 0
    %vm2028 = vcmp.ge.bf16.partialorder %v1964, 0
    %vm2029 = vcmp.ge.bf16.partialorder %v1965, 0
    %vm2030 = vcmp.ge.bf16.partialorder %v1966, 0
    %vm2031 = vcmp.ge.bf16.partialorder %v1967, 0
    %vm2032 = vcmp.ge.bf16.partialorder %v1968, 0
    %vm2033 = vcmp.ge.bf16.partialorder %v1969, 0
    %vm2034 = vcmp.ge.bf16.partialorder %v1970, 0
    %vm2035 = vcmp.ge.bf16.partialorder %v1971, 0
    %vm2036 = vcmp.ge.bf16.partialorder %v1972, 0
    %vm2037 = vcmp.ge.bf16.partialorder %v1973, 0
    %vm2038 = vcmp.ge.bf16.partialorder %v1974, 0
    %vm2039 = vcmp.ge.bf16.partialorder %v1975, 0
    %vm2040 = vcmp.ge.bf16.partialorder %v1976, 0
    %vm2041 = vcmp.ge.bf16.partialorder %v1977, 0
    %vm2042 = vcmp.ge.bf16.partialorder %v1978, 0
    %vm2043 = vcmp.ge.bf16.partialorder %v1979, 0
    %vm2044 = vcmp.ge.bf16.partialorder %v1980, 0
    %vm2045 = vcmp.ge.bf16.partialorder %v1981, 0
    %vm2046 = vcmp.ge.bf16.partialorder %v1982, 0
    %vm2047 = vcmp.ge.bf16.partialorder %v1983, 0
    %vm2048 = vcmp.ge.bf16.partialorder %v1984, 0
    %vm2049 = vcmp.ge.bf16.partialorder %v1985, 0
    %vm2050 = vcmp.ge.bf16.partialorder %v1986, 0
    %vm2051 = vcmp.ge.bf16.partialorder %v1987, 0
    %vm2052 = vcmp.ge.bf16.partialorder %v1988, 0
    %vm2053 = vcmp.ge.bf16.partialorder %v1989, 0
    %vm2054 = vcmp.ge.bf16.partialorder %v1990, 0
    %vm2055 = vcmp.ge.bf16.partialorder %v1991, 0
    %vm2056 = vcmp.ge.bf16.partialorder %v1992, 0
    %vm2057 = vcmp.ge.bf16.partialorder %v1993, 0
    %vm2058 = vcmp.ge.bf16.partialorder %v1994, 0
    %vm2059 = vcmp.ge.bf16.partialorder %v1995, 0
    %vm2060 = vcmp.ge.bf16.partialorder %v1996, 0
    %vm2061 = vcmp.ge.bf16.partialorder %v1997, 0
    %vm2062 = vcmp.ge.bf16.partialorder %v1998, 0
    %vm2063 = vcmp.ge.bf16.partialorder %v1999, 0
    %vm2064 = vcmp.ge.bf16.partialorder %v2000, 0
    %vm2065 = vcmp.ge.bf16.partialorder %v2001, 0
    %vm2066 = vcmp.ge.bf16.partialorder %v2002, 0
    %vm2067 = vcmp.ge.bf16.partialorder %v2003, 0
    %vm2068 = vcmp.ge.bf16.partialorder %v2004, 0
    %vm2069 = vcmp.ge.bf16.partialorder %v2005, 0
    %vm2070 = vcmp.ge.bf16.partialorder %v2006, 0
    %vm2071 = vcmp.ge.bf16.partialorder %v2007, 0
    %vm2072 = vcmp.ge.bf16.partialorder %v2008, 0
    %vm2073 = vcmp.ge.bf16.partialorder %v2009, 0
    %vm2074 = vcmp.ge.bf16.partialorder %v2010, 0
    %vm2075 = vcmp.ge.bf16.partialorder %v2011, 0
    %vm2076 = vcmp.ge.bf16.partialorder %v2012, 0
    %vm2077 = vcmp.ge.bf16.partialorder %v2013, 0
    %vm2078 = vcmp.ge.bf16.partialorder %v2014, 0
    %vm2079 = vcmp.ge.bf16.partialorder %v2015, 0
    %vm2080 = vcmp.ge.bf16.partialorder %v2016, 0
    %vm2081 = vcmp.ge.bf16.partialorder %v2017, 0
    %v2082 = vmul.bf16 %v1954, 1009007652
    %v2083 = vmul.bf16 %v1955, 1009007652
    %v2084 = vmul.bf16 %v1956, 1009007652
    %v2085 = vmul.bf16 %v1957, 1009007652
    %v2086 = vmul.bf16 %v1958, 1009007652
    %v2087 = vmul.bf16 %v1959, 1009007652
    %v2088 = vmul.bf16 %v1960, 1009007652
    %v2089 = vmul.bf16 %v1961, 1009007652
    %v2090 = vmul.bf16 %v1962, 1009007652
    %v2091 = vmul.bf16 %v1963, 1009007652
    %v2092 = vmul.bf16 %v1964, 1009007652
    %v2093 = vmul.bf16 %v1965, 1009007652
    %v2094 = vmul.bf16 %v1966, 1009007652
    %v2095 = vmul.bf16 %v1967, 1009007652
    %v2096 = vmul.bf16 %v1968, 1009007652
    %v2097 = vmul.bf16 %v1969, 1009007652
    %v2098 = vmul.bf16 %v1970, 1009007652
    %v2099 = vmul.bf16 %v1971, 1009007652
    %v2100 = vmul.bf16 %v1972, 1009007652
    %v2101 = vmul.bf16 %v1973, 1009007652
    %v2102 = vmul.bf16 %v1974, 1009007652
    %v2103 = vmul.bf16 %v1975, 1009007652
    %v2104 = vmul.bf16 %v1976, 1009007652
    %v2105 = vmul.bf16 %v1977, 1009007652
    %v2106 = vmul.bf16 %v1978, 1009007652
    %v2107 = vmul.bf16 %v1979, 1009007652
    %v2108 = vmul.bf16 %v1980, 1009007652
    %v2109 = vmul.bf16 %v1981, 1009007652
    %v2110 = vmul.bf16 %v1982, 1009007652
    %v2111 = vmul.bf16 %v1983, 1009007652
    %v2112 = vmul.bf16 %v1984, 1009007652
    %v2113 = vmul.bf16 %v1985, 1009007652
    %v2114 = vmul.bf16 %v1986, 1009007652
    %v2115 = vmul.bf16 %v1987, 1009007652
    %v2116 = vmul.bf16 %v1988, 1009007652
    %v2117 = vmul.bf16 %v1989, 1009007652
    %v2118 = vmul.bf16 %v1990, 1009007652
    %v2119 = vmul.bf16 %v1991, 1009007652
    %v2120 = vmul.bf16 %v1992, 1009007652
    %v2121 = vmul.bf16 %v1993, 1009007652
    %v2122 = vmul.bf16 %v1994, 1009007652
    %v2123 = vmul.bf16 %v1995, 1009007652
    %v2124 = vmul.bf16 %v1996, 1009007652
    %v2125 = vmul.bf16 %v1997, 1009007652
    %v2126 = vmul.bf16 %v1998, 1009007652
    %v2127 = vmul.bf16 %v1999, 1009007652
    %v2128 = vmul.bf16 %v2000, 1009007652
    %v2129 = vmul.bf16 %v2001, 1009007652
    %v2130 = vmul.bf16 %v2002, 1009007652
    %v2131 = vmul.bf16 %v2003, 1009007652
    %v2132 = vmul.bf16 %v2004, 1009007652
    %v2133 = vmul.bf16 %v2005, 1009007652
    %v2134 = vmul.bf16 %v2006, 1009007652
    %v2135 = vmul.bf16 %v2007, 1009007652
    %v2136 = vmul.bf16 %v2008, 1009007652
    %v2137 = vmul.bf16 %v2009, 1009007652
    %v2138 = vmul.bf16 %v2010, 1009007652
    %v2139 = vmul.bf16 %v2011, 1009007652
    %v2140 = vmul.bf16 %v2012, 1009007652
    %v2141 = vmul.bf16 %v2013, 1009007652
    %v2142 = vmul.bf16 %v2014, 1009007652
    %v2143 = vmul.bf16 %v2015, 1009007652
    %v2144 = vmul.bf16 %v2016, 1009007652
    %v2145 = vmul.bf16 %v2017, 1009007652
    %v2146 = vsel %vm2018, %v1954, %v2082
    %v2147 = vsel %vm2019, %v1955, %v2083
    %v2148 = vsel %vm2020, %v1956, %v2084
    %v2149 = vsel %vm2021, %v1957, %v2085
    %v2150 = vsel %vm2022, %v1958, %v2086
    %v2151 = vsel %vm2023, %v1959, %v2087
    %v2152 = vsel %vm2024, %v1960, %v2088
    %v2153 = vsel %vm2025, %v1961, %v2089
    %v2154 = vsel %vm2026, %v1962, %v2090
    %v2155 = vsel %vm2027, %v1963, %v2091
    %v2156 = vsel %vm2028, %v1964, %v2092
    %v2157 = vsel %vm2029, %v1965, %v2093
    %v2158 = vsel %vm2030, %v1966, %v2094
    %v2159 = vsel %vm2031, %v1967, %v2095
    %v2160 = vsel %vm2032, %v1968, %v2096
    %v2161 = vsel %vm2033, %v1969, %v2097
    %v2162 = vsel %vm2034, %v1970, %v2098
    %v2163 = vsel %vm2035, %v1971, %v2099
    %v2164 = vsel %vm2036, %v1972, %v2100
    %v2165 = vsel %vm2037, %v1973, %v2101
    %v2166 = vsel %vm2038, %v1974, %v2102
    %v2167 = vsel %vm2039, %v1975, %v2103
    %v2168 = vsel %vm2040, %v1976, %v2104
    %v2169 = vsel %vm2041, %v1977, %v2105
    %v2170 = vsel %vm2042, %v1978, %v2106
    %v2171 = vsel %vm2043, %v1979, %v2107
    %v2172 = vsel %vm2044, %v1980, %v2108
    %v2173 = vsel %vm2045, %v1981, %v2109
    %v2174 = vsel %vm2046, %v1982, %v2110
    %v2175 = vsel %vm2047, %v1983, %v2111
    %v2176 = vsel %vm2048, %v1984, %v2112
    %v2177 = vsel %vm2049, %v1985, %v2113
    %v2178 = vsel %vm2050, %v1986, %v2114
    %v2179 = vsel %vm2051, %v1987, %v2115
    %v2180 = vsel %vm2052, %v1988, %v2116
    %v2181 = vsel %vm2053, %v1989, %v2117
    %v2182 = vsel %vm2054, %v1990, %v2118
    %v2183 = vsel %vm2055, %v1991, %v2119
    %v2184 = vsel %vm2056, %v1992, %v2120
    %v2185 = vsel %vm2057, %v1993, %v2121
    %v2186 = vsel %vm2058, %v1994, %v2122
    %v2187 = vsel %vm2059, %v1995, %v2123
    %v2188 = vsel %vm2060, %v1996, %v2124
    %v2189 = vsel %vm2061, %v1997, %v2125
    %v2190 = vsel %vm2062, %v1998, %v2126
    %v2191 = vsel %vm2063, %v1999, %v2127
    %v2192 = vsel %vm2064, %v2000, %v2128
    %v2193 = vsel %vm2065, %v2001, %v2129
    %v2194 = vsel %vm2066, %v2002, %v2130
    %v2195 = vsel %vm2067, %v2003, %v2131
    %v2196 = vsel %vm2068, %v2004, %v2132
    %v2197 = vsel %vm2069, %v2005, %v2133
    %v2198 = vsel %vm2070, %v2006, %v2134
    %v2199 = vsel %vm2071, %v2007, %v2135
    %v2200 = vsel %vm2072, %v2008, %v2136
    %v2201 = vsel %vm2073, %v2009, %v2137
    %v2202 = vsel %vm2074, %v2010, %v2138
    %v2203 = vsel %vm2075, %v2011, %v2139
    %v2204 = vsel %vm2076, %v2012, %v2140
    %v2205 = vsel %vm2077, %v2013, %v2141
    %v2206 = vsel %vm2078, %v2014, %v2142
    %v2207 = vsel %vm2079, %v2015, %v2143
    %v2208 = vsel %vm2080, %v2016, %v2144
    %v2209 = vsel %vm2081, %v2017, %v2145
    %v2210 = vld [vmem:[%s9] sm:$0x3]
    %v2211 = vld [vmem:[#allocation2] sm:$0x1]
    %2213 = vset.pattern.permute.xlu0 0
    %2214 = vperm.xlu0 %2213, %v2211
    %v2215 = vpop.permute.xlu0 %2214
    %v2217 = vlaneseq
    %v2218 = vshrl.u32 %v2217, 7
    %v2219 = vsub.s32 0, %v2218
    %v2220 = vrot.slane %v2215, %v2219
    %v2223 = vunpack.c.l.s4 1966171168
    %v2224 = vunpack.c.0.s8 %v2223
    %v2225 = vlaneseq
    %v2226 = vshrl.u32 %v2225, 7
    %v2227 = vsub.s32 %v2224, %v2226
    %v2228 = vrot.slane %v2210, %v2227
    %v2229 = vcombine.high %v2228, %v2228
    %v2231 = vunpack.c.l.s4 1966171168
    %v2232 = vunpack.c.0.s8 %v2231
    %v2233 = vlaneseq
    %v2234 = vshrl.u32 %v2233, 7
    %v2235 = vsub.s32 %v2232, %v2234
    %v2236 = vrot.slane %v2228, %v2235
    %v2238 = vunpack.c.l.s4 1966171168
    %v2239 = vunpack.c.0.s8 %v2238
    %v2240 = vlaneseq
    %v2241 = vshrl.u32 %v2240, 7
    %v2242 = vsub.s32 %v2239, %v2241
    %v2243 = vrot.slane %v2229, %v2242
    %2246 = vmatprep.subr.bf16.mxu0 %v2175
    %2247 = vmatpush1.bf16.msra.mxu0 %v2174
    %2248 = vmatprep.subr.bf16.mxu0 %v2171
    %2249 = vmatpush1.bf16.msra.mxu0 %v2170
    %2250 = vmatprep.subr.bf16.mxu0 %v2167
    %2251 = vmatpush1.bf16.msra.mxu0 %v2166
    %2252 = vmatprep.subr.bf16.mxu0 %v2163
    %2253 = vmatpush1.bf16.msra.mxu0 %v2162
    %2254 = vmatprep.subr.bf16.mxu0 %v2159
    %2255 = vmatpush1.bf16.msra.mxu0 %v2158
    %2256 = vmatprep.subr.bf16.mxu0 %v2155
    %2257 = vmatpush1.bf16.msra.mxu0 %v2154
    %2258 = vmatprep.subr.bf16.mxu0 %v2151
    %2259 = vmatpush1.bf16.msra.mxu0 %v2150
    %2260 = vmatprep.subr.bf16.mxu0 %v2147
    %2261 = vmatpush1.bf16.msra.mxu0 %v2146
    %2262 = vmatprep.subr.bf16.mxu0 %v2207
    %2263 = vmatpush2.bf16.msra.mxu0 %v2206
    %2264 = vmatprep.subr.bf16.mxu0 %v2203
    %2265 = vmatpush2.bf16.msra.mxu0 %v2202
    %2266 = vmatprep.subr.bf16.mxu0 %v2199
    %2267 = vmatpush2.bf16.msra.mxu0 %v2198
    %2268 = vmatprep.subr.bf16.mxu0 %v2195
    %2269 = vmatpush2.bf16.msra.mxu0 %v2194
    %2270 = vmatprep.subr.bf16.mxu0 %v2191
    %2271 = vmatpush2.bf16.msra.mxu0 %v2190
    %2272 = vmatprep.subr.bf16.mxu0 %v2187
    %2273 = vmatpush2.bf16.msra.mxu0 %v2186
    %2274 = vmatprep.subr.bf16.mxu0 %v2183
    %2275 = vmatpush2.bf16.msra.mxu0 %v2182
    %2276 = vmatprep.subr.bf16.mxu0 %v2179
    %2277 = vmatpush2.bf16.msra.mxu0 %v2178
    %2278 = vmatprep.mubr.bf16.mxu0 %v2243
    %2279 = vmatmul.mubr.bf16.gmra.mxu0 %v2236
    %v2280 = vpop.f32.mrf.mxu0
    %v2281 = vadd.f32 %v2220, %v2280
    %v2282 = vpop.f32.mrf.mxu0
    %v2283 = vadd.f32 %v2220, %v2282
    %v2284 = vpop.f32.mrf.mxu0
    %v2285 = vpop.f32.mrf.mxu0
    %2286 = vdwg.mxu0
    %2287 = vmatprep.subr.bf16.mxu0 %v2177
    %2288 = vmatpush1.bf16.msra.mxu0 %v2176
    %2289 = vmatprep.subr.bf16.mxu0 %v2173
    %2290 = vmatpush1.bf16.msra.mxu0 %v2172
    %2291 = vmatprep.subr.bf16.mxu0 %v2169
    %2292 = vmatpush1.bf16.msra.mxu0 %v2168
    %2293 = vmatprep.subr.bf16.mxu0 %v2165
    %2294 = vmatpush1.bf16.msra.mxu0 %v2164
    %2295 = vmatprep.subr.bf16.mxu0 %v2161
    %2296 = vmatpush1.bf16.msra.mxu0 %v2160
    %2297 = vmatprep.subr.bf16.mxu0 %v2157
    %2298 = vmatpush1.bf16.msra.mxu0 %v2156
    %2299 = vmatprep.subr.bf16.mxu0 %v2153
    %2300 = vmatpush1.bf16.msra.mxu0 %v2152
    %2301 = vmatprep.subr.bf16.mxu0 %v2149
    %2302 = vmatpush1.bf16.msra.mxu0 %v2148
    %2303 = vmatprep.subr.bf16.mxu0 %v2209
    %2304 = vmatpush2.bf16.msra.mxu0 %v2208
    %2305 = vmatprep.subr.bf16.mxu0 %v2205
    %2306 = vmatpush2.bf16.msra.mxu0 %v2204
    %2307 = vmatprep.subr.bf16.mxu0 %v2201
    %2308 = vmatpush2.bf16.msra.mxu0 %v2200
    %2309 = vmatprep.subr.bf16.mxu0 %v2197
    %2310 = vmatpush2.bf16.msra.mxu0 %v2196
    %2311 = vmatprep.subr.bf16.mxu0 %v2193
    %2312 = vmatpush2.bf16.msra.mxu0 %v2192
    %2313 = vmatprep.subr.bf16.mxu0 %v2189
    %2314 = vmatpush2.bf16.msra.mxu0 %v2188
    %2315 = vmatprep.subr.bf16.mxu0 %v2185
    %2316 = vmatpush2.bf16.msra.mxu0 %v2184
    %2317 = vmatprep.subr.bf16.mxu0 %v2181
    %2318 = vmatpush2.bf16.msra.mxu0 %v2180
    %2319 = vmatprep.mubr.bf16.mxu0 %v2243
    %2320 = vmatmul.mubr.bf16.gmra.mxu0 %v2236
    %v2321 = vpop.f32.mrf.mxu0
    %v2322 = vadd.f32 %v2220, %v2321
    %v2323 = vpop.f32.mrf.mxu0
    %v2324 = vadd.f32 %v2220, %v2323
    %v2325 = vpop.f32.mrf.mxu0
    %v2326 = vpop.f32.mrf.mxu0
    %2327 = vdwg.mxu0
    %v2332 = vcombine.low %v2281, %v2283
    %v2333 = vcombine.low %v2322, %v2324
    %v2335 = vunpack.c.l.s4 1966171168
    %v2336 = vunpack.c.0.s8 %v2335
    %v2337 = vlaneseq
    %v2338 = vshrl.u32 %v2337, 7
    %v2339 = vsub.s32 %v2336, %v2338
    %v2340 = vrot.slane %v2332, %v2339
    %v2342 = vunpack.c.l.s4 1966171168
    %v2343 = vunpack.c.0.s8 %v2342
    %v2344 = vlaneseq
    %v2345 = vshrl.u32 %v2344, 7
    %v2346 = vsub.s32 %v2343, %v2345
    %v2347 = vrot.slane %v2333, %v2346
    %v2348 = vcombine.low %v2340, %v2347
    %v2350 = vunpack.c.l.s4 1966171168
    %v2351 = vunpack.c.0.s8 %v2350
    %v2352 = vlaneseq
    %v2353 = vshrl.u32 %v2352, 7
    %v2354 = vsub.s32 %v2351, %v2353
    %v2355 = vrot.slane %v2348, %v2354
    %v2357 = vlaneseq
    %vm2358 = vcmp.ge.s32.totalorder %v2357, 0
    %vm2359 = vcmp.lt.s32.totalorder %v2357, 512
    %vm2360 = vmand %vm2358, %vm2359
    %2361 = vst.msk [vmem:[#allocation3] sm:$0xf] %vm2360, %v2355
    // Predicated region
    $region46: #{mlp_forward.1} parent=1 // pred_check
      _
    $region47: #{mlp_forward.1} parent=1 // pred_check_branch
      %2363 = sbr.rel (0) target = $region49
    $region48: #{mlp_forward.1} parent=1 // pred_region
      %s2365 = ssub.s32 64, 64
      %2366 = vsyncadd [#allocation4], %s2365
      %s2368 = sshll.u32 [#allocation3], 4
      %s2369 = int_to_ptr.vmem [resolvable:$true] %s2368
      %2371 = dma.vmem_to_hbm [thread:$0]  %s2369, 64, %s11, [#allocation4]
    $region49: #{mlp_forward.1} parent=1 // pred_fallthru
      _
    // Predicated region
    $region50: #{mlp_forward.1} parent=1 // pred_check
      _
    $region51: #{mlp_forward.1} parent=1 // pred_check_branch
      %2373 = sbr.rel (0) target = $region53
    $region52: #{mlp_forward.1} parent=1 // pred_region
      %2374 = dma.done [#allocation4], 64
    $region53: #{mlp_forward.1} parent=1 // pred_fallthru
      _
    %2375 = vsyncpa [#allocation4], 1

</llo_original>
